<compile_context>
chip_gen: v7x
topology: tpu7x:2x2x1
jax: 0.10.0
libtpu: 0.0.40
codegen_flags: <defaults>
</compile_context>

<pallas_src>
import functools
import math

import jax
import jax.numpy as jnp
from jax.experimental import pallas as pl
from jax.experimental.pallas import tpu as pltpu  # noqa: F401  (TPU backend assumed)

LRELU_ALPHA = 0.2
LRELU_GAIN = math.sqrt(2.0)
MBSTD_EPS = 1e-8


def _lrelu(v):
    return jnp.where(v >= 0, v, LRELU_ALPHA * v) * LRELU_GAIN


# -------------------- kernel 1: minibatch-std + 3x3 conv ---------------------

def _mbstd_conv_kernel(x_ref, p_ref, wc_ref, bc_ref, m_ref, e_ref, *, G, n, HW):
    """MinibatchStdLayer (num_channels=1) + Conv2dLayer(k=3, pad=1, 'lrelu'), fused.

    x_ref : [B*HW, C]    input activations, NHWC-flat (rows ordered (b, h, w))
    p_ref : [B*HW, 9*C]  zero-padded 3x3 im2col patches of x (tap-major, ch-minor)
    wc_ref: [9*C, Cout]  conv weight for the C data channels, pre-scaled by weight_gain
    bc_ref: [1, Cout]    conv bias
    m_ref : [HW, Cout]   border-masked conv response of the (spatially constant)
                         mbstd channel, pre-scaled by weight_gain
    e_ref : [B*HW, Cout] output: lrelu(conv(cat(x, mbstd)) + b) * sqrt(2)
    """
    x = x_ref[...]
    C = x.shape[-1]

    # --- MinibatchStdLayer: one std scalar per stats group m = b % n ---
    xg = x.reshape(G, n * HW, C)                              # group-major
    mu = jnp.mean(xg, axis=0, keepdims=True)
    var = jnp.mean((xg - mu) * (xg - mu), axis=0)             # [n*HW, C]
    std = jnp.sqrt(var + MBSTD_EPS).reshape(n, HW, C)
    s = jnp.mean(jnp.mean(std, axis=2, keepdims=True), axis=1, keepdims=True)  # [n,1,1]

    # --- 3x3 conv as one MXU matmul + rank-1 mbstd-channel correction ---
    acc = jnp.dot(p_ref[...], wc_ref[...], preferred_element_type=jnp.float32)  # [B*HW,Cout]
    Cout = acc.shape[-1]
    contrib = s[None] * m_ref[...][None, None]                # [1, n, HW, Cout]
    acc = (acc.reshape(G, n, HW, Cout) + contrib).reshape(G * n * HW, Cout)
    e_ref[...] = _lrelu(acc + bc_ref[...])


# ------------------ kernel 2: fc + lrelu + cmap projection -------------------

def _fc_cmap_kernel(e_ref, wf_ref, bf_ref, cmap_ref, o_ref, *, inv_sqrt_cmap):
    """FullyConnectedLayer ('lrelu') + conditioning-map projection, fused.

    e_ref   : [B, HW*Cout]  conv output, NHWC-flat per batch
    wf_ref  : [HW*Cout, Z]  fc weight, columns permuted to (h, w, c), pre-scaled
    bf_ref  : [1, Z]
    cmap_ref: [B, Z]        conditioning map (cmap_dim == z_dim)
    o_ref   : [B, 1]
    """
    z = jnp.dot(e_ref[...], wf_ref[...], preferred_element_type=jnp.float32)
    z = _lrelu(z + bf_ref[...])
    # TODO(synk): torch.nn.Dropout(p=0.5) is treated as inference-mode identity.
    o_ref[...] = jnp.sum(z * cmap_ref[...], axis=1, keepdims=True) * inv_sqrt_cmap


# --------------------------------- wrapper -----------------------------------

def encoder_epilogue_forward(x, cmap, params, *, mbstd_group_size=4):
    """EncoderEpilogue.forward (architecture='resnet', mbstd_num_channels=1,
    activation='lrelu', conv_clamp=None, cmap_dim > 0). Returns (z, const_e)."""
    B, C, H, W = x.shape
    HW = H * W
    conv_w = params["conv_w"].astype(jnp.float32)             # [Cout, C+1, 3, 3]
    Cout = conv_w.shape[0]
    Zd = params["fc_w"].shape[0]
    G = min(mbstd_group_size, B)
    assert B % G == 0
    n = B // G

    x = x.astype(jnp.float32)
    x_nhwc = jnp.transpose(x, (0, 2, 3, 1))                   # [B, H, W, C]
    x_flat = x_nhwc.reshape(B * HW, C)

    # 3x3 zero-padded im2col, tap-major / channel-minor: [B*HW, 9*C]
    xp = jnp.pad(x_nhwc, ((0, 0), (1, 1), (1, 1), (0, 0)))
    patches = jnp.concatenate(
        [xp[:, kh:kh + H, kw:kw + W, :] for kh in range(3) for kw in range(3)],
        axis=-1).reshape(B * HW, 9 * C)

    # Conv2dLayer weight prep: fold weight_gain, split off the mbstd channel.
    wg = 1.0 / math.sqrt((C + 1) * 9)                         # in_ch = C + 1, k = 3
    w_x = jnp.transpose(conv_w[:, :C] * wg, (2, 3, 1, 0)).reshape(9 * C, Cout)
    w_s = conv_w[:, C] * wg                                   # [Cout, 3, 3] mbstd channel
    # Per-pixel response of a spatially-constant channel under zero padding.
    hidx = jnp.arange(H)[:, None] + jnp.arange(3)[None, :] - 1
    widx = jnp.arange(W)[:, None] + jnp.arange(3)[None, :] - 1
    hval = ((hidx >= 0) & (hidx < H)).astype(jnp.float32)     # [H, 3]
    wval = ((widx >= 0) & (widx < W)).astype(jnp.float32)     # [W, 3]
    valid = hval[:, None, :, None] * wval[None, :, None, :]   # [H, W, 3, 3]
    m_map = jnp.einsum("hwij,oij->hwo", valid, w_s).reshape(HW, Cout)
    bc = params["conv_b"].astype(jnp.float32).reshape(1, Cout)

    e_flat = pl.pallas_call(
        functools.partial(_mbstd_conv_kernel, G=G, n=n, HW=HW),
        out_shape=jax.ShapeDtypeStruct((B * HW, Cout), jnp.float32),
    )(x_flat, patches, w_x, bc, m_map)

    # const_e returned in PyTorch NCHW layout.
    const_e = jnp.transpose(e_flat.reshape(B, H, W, Cout), (0, 3, 1, 2))

    # FullyConnectedLayer: fold weight_gain and permute weight rows from
    # (c, h, w) to (h, w, c) order so the NHWC-flat activation feeds straight in.
    fg = 1.0 / math.sqrt(Cout * HW)
    wf = (params["fc_w"].astype(jnp.float32) * fg).reshape(Zd, Cout, H, W)
    wf = jnp.transpose(wf, (2, 3, 1, 0)).reshape(HW * Cout, Zd)
    bf = params["fc_b"].astype(jnp.float32).reshape(1, Zd)

    cmap_dim = cmap.shape[1]
    z = pl.pallas_call(
        functools.partial(_fc_cmap_kernel, inv_sqrt_cmap=1.0 / math.sqrt(cmap_dim)),
        out_shape=jax.ShapeDtypeStruct((B, 1), jnp.float32),
    )(e_flat.reshape(B, HW * Cout), wf, bf, cmap.astype(jnp.float32))
    return z, const_e


# -------------------------- pure-jnp reference check -------------------------

def _reference_forward(x, cmap, params, *, mbstd_group_size=4):
    B, C, H, W = x.shape
    x = x.astype(jnp.float32)
    G = min(mbstd_group_size, B)
    n = B // G
    y = x.reshape(G, n, 1, C, H, W)
    y = y - jnp.mean(y, axis=0, keepdims=True)
    y = jnp.mean(y * y, axis=0)
    y = jnp.sqrt(y + MBSTD_EPS)
    y = jnp.mean(y, axis=(2, 3, 4))                           # [n, 1]
    y = jnp.tile(y.reshape(n, 1, 1, 1), (G, 1, H, W))         # [B, 1, H, W]
    x_aug = jnp.concatenate([x, y], axis=1)

    wg = 1.0 / math.sqrt((C + 1) * 9)
    c = jax.lax.conv_general_dilated(
        x_aug, params["conv_w"].astype(jnp.float32) * wg, (1, 1), ((1, 1), (1, 1)),
        dimension_numbers=("NCHW", "OIHW", "NCHW"),
        precision=jax.lax.Precision.HIGHEST)
    c = c + params["conv_b"].reshape(1, -1, 1, 1)
    const_e = jnp.where(c >= 0, c, LRELU_ALPHA * c) * LRELU_GAIN

    fg = 1.0 / math.sqrt(const_e[0].size)
    z = jnp.dot(const_e.reshape(B, -1), (params["fc_w"] * fg).T,
                precision=jax.lax.Precision.HIGHEST)
    z = z + params["fc_b"]
    z = jnp.where(z >= 0, z, LRELU_ALPHA * z) * LRELU_GAIN
    z = jnp.sum(z * cmap, axis=1, keepdims=True) / math.sqrt(cmap.shape[1])
    return z, const_e


# ----------------------------------- main ------------------------------------

if __name__ == "__main__":
    # EncoderEpilogue(in_channels=16, cmap_dim=32, z_dim=32, resolution=8,
    #                 img_channels=3, architecture='resnet', mbstd_group_size=4,
    #                 mbstd_num_channels=1, activation='lrelu', conv_clamp=None)
    B, C, R, Z, CMAP = 4, 16, 8, 32, 32
    key = jax.random.PRNGKey(0)
    kx, kc, kw1, kb1, kw2, kb2 = jax.random.split(key, 6)
    x = jax.random.normal(kx, (B, C, R, R), jnp.float32)
    cmap = jax.random.normal(kc, (B, CMAP), jnp.float32)
    params = {
        "conv_w": jax.random.normal(kw1, (C, C + 1, 3, 3), jnp.float32),
        "conv_b": 0.1 * jax.random.normal(kb1, (C,), jnp.float32),
        "fc_w": jax.random.normal(kw2, (Z, C * R * R), jnp.float32),
        "fc_b": 0.1 * jax.random.normal(kb2, (Z,), jnp.float32),
    }

    fwd = jax.jit(encoder_epilogue_forward)
    z, const_e = fwd(x, cmap, params)
    jax.block_until_ready((z, const_e))
    assert z.shape == (B, 1) and const_e.shape == (B, C, R, R)

    z_ref, e_ref = _reference_forward(x, cmap, params)
    assert jnp.allclose(const_e, e_ref, rtol=2e-2, atol=2e-2)
    assert jnp.allclose(z, z_ref, rtol=2e-2, atol=2e-2)
    print("KERNEL_OK")
</pallas_src>

<mosaic_0001>
module attributes {stable_mosaic.version = 11 : i64} {
  func.func @_mbstd_conv_kernel(%arg0: memref<256x16xf32, #tpu.memory_space<vmem>>, %arg1: memref<256x144xf32, #tpu.memory_space<vmem>>, %arg2: memref<144x16xf32, #tpu.memory_space<vmem>>, %arg3: memref<1x16xf32, #tpu.memory_space<vmem>>, %arg4: memref<64x16xf32, #tpu.memory_space<vmem>>, %arg5: memref<256x16xf32, #tpu.memory_space<vmem>>) attributes {dimension_semantics = [], scalar_prefetch = 0 : i64, scratch_operands = 0 : i64, tpu.core_type = #tpu.core_type<tc>} {
    %c0 = arith.constant 0 : index
    %c0_0 = arith.constant 0 : index
    %0 = vector.load %arg0[%c0, %c0_0] : memref<256x16xf32, #tpu.memory_space<vmem>>, vector<256x16xf32>
    %1 = vector.shape_cast %0 : vector<256x16xf32> to vector<4x64x16xf32>
    %cst = arith.constant dense<0.000000e+00> : vector<64x16xf32>
    %2 = vector.multi_reduction <add>, %1, %cst [0] : vector<4x64x16xf32> to vector<64x16xf32>
    %3 = vector.shape_cast %2 : vector<64x16xf32> to vector<1x64x16xf32>
    %cst_1 = arith.constant 4.000000e+00 : f32
    %4 = vector.broadcast %cst_1 : f32 to vector<1x64x16xf32>
    %5 = arith.divf %3, %4 : vector<1x64x16xf32>
    %6 = vector.broadcast %5 : vector<1x64x16xf32> to vector<4x64x16xf32>
    %7 = arith.subf %1, %6 : vector<4x64x16xf32>
    %8 = vector.broadcast %5 : vector<1x64x16xf32> to vector<4x64x16xf32>
    %9 = arith.subf %1, %8 : vector<4x64x16xf32>
    %10 = arith.mulf %7, %9 : vector<4x64x16xf32>
    %cst_2 = arith.constant dense<0.000000e+00> : vector<64x16xf32>
    %11 = vector.multi_reduction <add>, %10, %cst_2 [0] : vector<4x64x16xf32> to vector<64x16xf32>
    %cst_3 = arith.constant 4.000000e+00 : f32
    %12 = vector.broadcast %cst_3 : f32 to vector<64x16xf32>
    %13 = arith.divf %11, %12 : vector<64x16xf32>
    %cst_4 = arith.constant 9.99999993E-9 : f32
    %14 = vector.broadcast %cst_4 : f32 to vector<64x16xf32>
    %15 = arith.addf %13, %14 : vector<64x16xf32>
    %16 = math.sqrt %15 : vector<64x16xf32>
    %17 = vector.shape_cast %16 : vector<64x16xf32> to vector<1x64x16xf32>
    %cst_5 = arith.constant dense<0.000000e+00> : vector<1x64xf32>
    %18 = vector.multi_reduction <add>, %17, %cst_5 [2] : vector<1x64x16xf32> to vector<1x64xf32>
    %19 = vector.shape_cast %18 : vector<1x64xf32> to vector<1x64x1xf32>
    %cst_6 = arith.constant 1.600000e+01 : f32
    %20 = vector.broadcast %cst_6 : f32 to vector<1x64x1xf32>
    %21 = arith.divf %19, %20 : vector<1x64x1xf32>
    %cst_7 = arith.constant dense<0.000000e+00> : vector<1x1xf32>
    %22 = vector.multi_reduction <add>, %21, %cst_7 [1] : vector<1x64x1xf32> to vector<1x1xf32>
    %23 = vector.shape_cast %22 : vector<1x1xf32> to vector<1x1x1xf32>
    %cst_8 = arith.constant 6.400000e+01 : f32
    %24 = vector.broadcast %cst_8 : f32 to vector<1x1x1xf32>
    %25 = arith.divf %23, %24 : vector<1x1x1xf32>
    %c0_9 = arith.constant 0 : index
    %c0_10 = arith.constant 0 : index
    %26 = vector.load %arg1[%c0_9, %c0_10] : memref<256x144xf32, #tpu.memory_space<vmem>>, vector<256x144xf32>
    %c0_11 = arith.constant 0 : index
    %c0_12 = arith.constant 0 : index
    %27 = vector.load %arg2[%c0_11, %c0_12] : memref<144x16xf32, #tpu.memory_space<vmem>>, vector<144x16xf32>
    %cst_13 = arith.constant dense<0.000000e+00> : vector<256x16xf32>
    %28 = tpu.matmul %26, %27, %cst_13 {dimension_numbers = #tpu.dot_dimension_numbers<[1], [0], [0], [1], [0, 0, 1, 1], [], []>} : vector<256x144xf32>, vector<144x16xf32>, vector<256x16xf32> -> vector<256x16xf32>
    %29 = vector.shape_cast %25 : vector<1x1x1xf32> to vector<1x1x1x1xf32>
    %c0_14 = arith.constant 0 : index
    %c0_15 = arith.constant 0 : index
    %30 = vector.load %arg4[%c0_14, %c0_15] : memref<64x16xf32, #tpu.memory_space<vmem>>, vector<64x16xf32>
    %31 = vector.shape_cast %30 : vector<64x16xf32> to vector<1x1x64x16xf32>
    %32 = vector.broadcast %29 : vector<1x1x1x1xf32> to vector<1x1x64x16xf32>
    %33 = arith.mulf %32, %31 : vector<1x1x64x16xf32>
    %34 = vector.shape_cast %28 : vector<256x16xf32> to vector<4x1x64x16xf32>
    %35 = vector.broadcast %33 : vector<1x1x64x16xf32> to vector<4x1x64x16xf32>
    %36 = arith.addf %34, %35 : vector<4x1x64x16xf32>
    %37 = vector.shape_cast %36 : vector<4x1x64x16xf32> to vector<256x16xf32>
    %c0_16 = arith.constant 0 : index
    %c0_17 = arith.constant 0 : index
    %38 = vector.load %arg3[%c0_16, %c0_17] : memref<1x16xf32, #tpu.memory_space<vmem>>, vector<1x16xf32>
    %39 = vector.broadcast %38 : vector<1x16xf32> to vector<256x16xf32>
    %40 = arith.addf %37, %39 : vector<256x16xf32>
    %cst_18 = arith.constant 0.000000e+00 : f32
    %41 = vector.broadcast %cst_18 : f32 to vector<256x16xf32>
    %42 = arith.cmpf oge, %40, %41 : vector<256x16xf32>
    %cst_19 = arith.constant 2.000000e-01 : f32
    %43 = vector.broadcast %cst_19 : f32 to vector<256x16xf32>
    %44 = arith.mulf %43, %40 : vector<256x16xf32>
    %45 = arith.select %42, %40, %44 : vector<256x16xi1>, vector<256x16xf32>
    %cst_20 = arith.constant 1.41421354 : f32
    %46 = vector.broadcast %cst_20 : f32 to vector<256x16xf32>
    %47 = arith.mulf %45, %46 : vector<256x16xf32>
    %c0_21 = arith.constant 0 : index
    %c0_22 = arith.constant 0 : index
    %48 = vector.load %arg5[%c0_21, %c0_22] : memref<256x16xf32, #tpu.memory_space<vmem>>, vector<256x16xf32>
    tpu.vector_store %arg5[%c0_21, %c0_22], %47 {strides = array<i32>} : memref<256x16xf32, #tpu.memory_space<vmem>>, vector<256x16xf32>,
    return
  }
}

module attributes {stable_mosaic.version = 11 : i64} {
  func.func @_fc_cmap_kernel(%arg0: memref<4x1024xf32, #tpu.memory_space<vmem>>, %arg1: memref<1024x32xf32, #tpu.memory_space<vmem>>, %arg2: memref<1x32xf32, #tpu.memory_space<vmem>>, %arg3: memref<4x32xf32, #tpu.memory_space<vmem>>, %arg4: memref<4x1xf32, #tpu.memory_space<vmem>>) attributes {dimension_semantics = [], scalar_prefetch = 0 : i64, scratch_operands = 0 : i64, tpu.core_type = #tpu.core_type<tc>} {
    %c0 = arith.constant 0 : index
    %c0_0 = arith.constant 0 : index
    %0 = vector.load %arg0[%c0, %c0_0] : memref<4x1024xf32, #tpu.memory_space<vmem>>, vector<4x1024xf32>
    %c0_1 = arith.constant 0 : index
    %c0_2 = arith.constant 0 : index
    %1 = vector.load %arg1[%c0_1, %c0_2] : memref<1024x32xf32, #tpu.memory_space<vmem>>, vector<1024x32xf32>
    %cst = arith.constant dense<0.000000e+00> : vector<4x32xf32>
    %2 = tpu.matmul %0, %1, %cst {dimension_numbers = #tpu.dot_dimension_numbers<[1], [0], [0], [1], [0, 0, 1, 1], [], []>} : vector<4x1024xf32>, vector<1024x32xf32>, vector<4x32xf32> -> vector<4x32xf32>
    %c0_3 = arith.constant 0 : index
    %c0_4 = arith.constant 0 : index
    %3 = vector.load %arg2[%c0_3, %c0_4] : memref<1x32xf32, #tpu.memory_space<vmem>>, vector<1x32xf32>
    %4 = vector.broadcast %3 : vector<1x32xf32> to vector<4x32xf32>
    %5 = arith.addf %2, %4 : vector<4x32xf32>
    %cst_5 = arith.constant 0.000000e+00 : f32
    %6 = vector.broadcast %cst_5 : f32 to vector<4x32xf32>
    %7 = arith.cmpf oge, %5, %6 : vector<4x32xf32>
    %cst_6 = arith.constant 2.000000e-01 : f32
    %8 = vector.broadcast %cst_6 : f32 to vector<4x32xf32>
    %9 = arith.mulf %8, %5 : vector<4x32xf32>
    %10 = arith.select %7, %5, %9 : vector<4x32xi1>, vector<4x32xf32>
    %cst_7 = arith.constant 1.41421354 : f32
    %11 = vector.broadcast %cst_7 : f32 to vector<4x32xf32>
    %12 = arith.mulf %10, %11 : vector<4x32xf32>
    %c0_8 = arith.constant 0 : index
    %c0_9 = arith.constant 0 : index
    %13 = vector.load %arg3[%c0_8, %c0_9] : memref<4x32xf32, #tpu.memory_space<vmem>>, vector<4x32xf32>
    %14 = arith.mulf %12, %13 : vector<4x32xf32>
    %cst_10 = arith.constant dense<0.000000e+00> : vector<4xf32>
    %15 = vector.multi_reduction <add>, %14, %cst_10 [1] : vector<4x32xf32> to vector<4xf32>
    %16 = vector.shape_cast %15 : vector<4xf32> to vector<4x1xf32>
    %cst_11 = arith.constant 0.176776692 : f32
    %17 = vector.broadcast %cst_11 : f32 to vector<4x1xf32>
    %18 = arith.mulf %16, %17 : vector<4x1xf32>
    %c0_12 = arith.constant 0 : index
    %c0_13 = arith.constant 0 : index
    %19 = vector.load %arg4[%c0_12, %c0_13] : memref<4x1xf32, #tpu.memory_space<vmem>>, vector<4x1xf32>
    tpu.vector_store %arg4[%c0_12, %c0_13], %18 {strides = array<i32>} : memref<4x1xf32, #tpu.memory_space<vmem>>, vector<4x1xf32>,
    return
  }
}

</mosaic_0001>

<llo_original>
// kernel: encoder_epilogue_forward.3
$region0: #{encoder_epilogue_forward.3}
  #allocation0 [shape = 'u32[]', space=smem, size = 0x4, offset = 0x4, fixed_abs, tag = 'smem constant byte address 0x4 - core index']
  #allocation1 [shape = 'u32[144,128]{1,0:T(1,128)}', space=vmem, size = 0x12000, scoped, tag = 'internal scratch']
  %s0 = inlined_call_operand.vmem [shape: f32[4,1024], index: 0, kind: input, shape index: {}]
  %s1 = inlined_call_operand.vmem [shape: f32[1024,32], index: 1, kind: input, shape index: {}]
  %s2 = inlined_call_operand.vmem [shape: f32[1,32], index: 2, kind: input, shape index: {}]
  %s3 = inlined_call_operand.vmem [shape: f32[4,32], index: 3, kind: input, shape index: {}]
  %s4 = inlined_call_operand.vmem [shape: f32[4,1], index: 4, kind: output, shape index: {}]
  %s5 = sld [smem:[#allocation0]]
  $region26: #{encoder_epilogue_forward.3} parent=0
    _
  %s7 = ssub.s32 1, %s5
  %s8 = scalar_select 0, %s7, %s5
  // Predicated region
  $region2: #{encoder_epilogue_forward.3} parent=0 // pred_check
    _
  $region3: #{encoder_epilogue_forward.3} parent=0 // pred_check_branch
    %10 = sbr.rel (0) target = $region5
  $region4: #{encoder_epilogue_forward.3} parent=0 // pred_region
    _
  $region5: #{encoder_epilogue_forward.3} parent=0 // pred_fallthru
    _
  // Predicated region
  $region6: #{encoder_epilogue_forward.3} parent=0 // pred_check
    _
  $region7: #{encoder_epilogue_forward.3} parent=0 // pred_check_branch
    %12 = sbr.rel (0) target = $region9
  $region8: #{encoder_epilogue_forward.3} parent=0 // pred_region
    _
  $region9: #{encoder_epilogue_forward.3} parent=0 // pred_fallthru
    _
  // Predicated region
  $region10: #{encoder_epilogue_forward.3} parent=0 // pred_check
    _
  $region11: #{encoder_epilogue_forward.3} parent=0 // pred_check_branch
    %14 = sbr.rel (0) target = $region13
  $region12: #{encoder_epilogue_forward.3} parent=0 // pred_region
    _
  $region13: #{encoder_epilogue_forward.3} parent=0 // pred_fallthru
    _
  // Predicated region
  $region14: #{encoder_epilogue_forward.3} parent=0 // pred_check
    _
  $region15: #{encoder_epilogue_forward.3} parent=0 // pred_check_branch
    %16 = sbr.rel (0) target = $region17
  $region16: #{encoder_epilogue_forward.3} parent=0 // pred_region
    _
  $region17: #{encoder_epilogue_forward.3} parent=0 // pred_fallthru
    _
  %v17 = vld [vmem:[%s0] sm:$0xff]
  %v18 = vld [vmem:[%s0 + $0x8] sm:$0xff]
  %v19 = vld [vmem:[%s0 + $0x10] sm:$0xff]
  %v20 = vld [vmem:[%s0 + $0x18] sm:$0xff]
  %v21 = vld [vmem:[%s1] sm:$0xff]
  %v22 = vld [vmem:[%s1 + $0x8] sm:$0xff]
  %v23 = vld [vmem:[%s1 + $0x10] sm:$0xff]
  %v24 = vld [vmem:[%s1 + $0x18] sm:$0xff]
  %v25 = vld [vmem:[%s1 + $0x20] sm:$0xff]
  %v26 = vld [vmem:[%s1 + $0x28] sm:$0xff]
  %v27 = vld [vmem:[%s1 + $0x30] sm:$0xff]
  %v28 = vld [vmem:[%s1 + $0x38] sm:$0xff]
  %v29 = vld [vmem:[%s1 + $0x40] sm:$0xff]
  %v30 = vld [vmem:[%s1 + $0x48] sm:$0xff]
  %v31 = vld [vmem:[%s1 + $0x50] sm:$0xff]
  %v32 = vld [vmem:[%s1 + $0x58] sm:$0xff]
  %v33 = vld [vmem:[%s1 + $0x60] sm:$0xff]
  %v34 = vld [vmem:[%s1 + $0x68] sm:$0xff]
  %v35 = vld [vmem:[%s1 + $0x70] sm:$0xff]
  %v36 = vld [vmem:[%s1 + $0x78] sm:$0xff]
  %v37 = vld [vmem:[%s1 + $0x80] sm:$0xff]
  %v38 = vld [vmem:[%s1 + $0x88] sm:$0xff]
  %v39 = vld [vmem:[%s1 + $0x90] sm:$0xff]
  %v40 = vld [vmem:[%s1 + $0x98] sm:$0xff]
  %v41 = vld [vmem:[%s1 + $0xa0] sm:$0xff]
  %v42 = vld [vmem:[%s1 + $0xa8] sm:$0xff]
  %v43 = vld [vmem:[%s1 + $0xb0] sm:$0xff]
  %v44 = vld [vmem:[%s1 + $0xb8] sm:$0xff]
  %v45 = vld [vmem:[%s1 + $0xc0] sm:$0xff]
  %v46 = vld [vmem:[%s1 + $0xc8] sm:$0xff]
  %v47 = vld [vmem:[%s1 + $0xd0] sm:$0xff]
  %v48 = vld [vmem:[%s1 + $0xd8] sm:$0xff]
  %v49 = vld [vmem:[%s1 + $0xe0] sm:$0xff]
  %v50 = vld [vmem:[%s1 + $0xe8] sm:$0xff]
  %v51 = vld [vmem:[%s1 + $0xf0] sm:$0xff]
  %v52 = vld [vmem:[%s1 + $0xf8] sm:$0xff]
  %v53 = vld [vmem:[%s1 + $0x100] sm:$0xff]
  %v54 = vld [vmem:[%s1 + $0x108] sm:$0xff]
  %v55 = vld [vmem:[%s1 + $0x110] sm:$0xff]
  %v56 = vld [vmem:[%s1 + $0x118] sm:$0xff]
  %v57 = vld [vmem:[%s1 + $0x120] sm:$0xff]
  %v58 = vld [vmem:[%s1 + $0x128] sm:$0xff]
  %v59 = vld [vmem:[%s1 + $0x130] sm:$0xff]
  %v60 = vld [vmem:[%s1 + $0x138] sm:$0xff]
  %v61 = vld [vmem:[%s1 + $0x140] sm:$0xff]
  %v62 = vld [vmem:[%s1 + $0x148] sm:$0xff]
  %v63 = vld [vmem:[%s1 + $0x150] sm:$0xff]
  %v64 = vld [vmem:[%s1 + $0x158] sm:$0xff]
  %v65 = vld [vmem:[%s1 + $0x160] sm:$0xff]
  %v66 = vld [vmem:[%s1 + $0x168] sm:$0xff]
  %v67 = vld [vmem:[%s1 + $0x170] sm:$0xff]
  %v68 = vld [vmem:[%s1 + $0x178] sm:$0xff]
  %v69 = vld [vmem:[%s1 + $0x180] sm:$0xff]
  %v70 = vld [vmem:[%s1 + $0x188] sm:$0xff]
  %v71 = vld [vmem:[%s1 + $0x190] sm:$0xff]
  %v72 = vld [vmem:[%s1 + $0x198] sm:$0xff]
  %v73 = vld [vmem:[%s1 + $0x1a0] sm:$0xff]
  %v74 = vld [vmem:[%s1 + $0x1a8] sm:$0xff]
  %v75 = vld [vmem:[%s1 + $0x1b0] sm:$0xff]
  %v76 = vld [vmem:[%s1 + $0x1b8] sm:$0xff]
  %v77 = vld [vmem:[%s1 + $0x1c0] sm:$0xff]
  %v78 = vld [vmem:[%s1 + $0x1c8] sm:$0xff]
  %v79 = vld [vmem:[%s1 + $0x1d0] sm:$0xff]
  %v80 = vld [vmem:[%s1 + $0x1d8] sm:$0xff]
  %v81 = vld [vmem:[%s1 + $0x1e0] sm:$0xff]
  %v82 = vld [vmem:[%s1 + $0x1e8] sm:$0xff]
  %v83 = vld [vmem:[%s1 + $0x1f0] sm:$0xff]
  %v84 = vld [vmem:[%s1 + $0x1f8] sm:$0xff]
  %v85 = vld [vmem:[%s1 + $0x200] sm:$0xff]
  %v86 = vld [vmem:[%s1 + $0x208] sm:$0xff]
  %v87 = vld [vmem:[%s1 + $0x210] sm:$0xff]
  %v88 = vld [vmem:[%s1 + $0x218] sm:$0xff]
  %v89 = vld [vmem:[%s1 + $0x220] sm:$0xff]
  %v90 = vld [vmem:[%s1 + $0x228] sm:$0xff]
  %v91 = vld [vmem:[%s1 + $0x230] sm:$0xff]
  %v92 = vld [vmem:[%s1 + $0x238] sm:$0xff]
  %v93 = vld [vmem:[%s1 + $0x240] sm:$0xff]
  %v94 = vld [vmem:[%s1 + $0x248] sm:$0xff]
  %v95 = vld [vmem:[%s1 + $0x250] sm:$0xff]
  %v96 = vld [vmem:[%s1 + $0x258] sm:$0xff]
  %v97 = vld [vmem:[%s1 + $0x260] sm:$0xff]
  %v98 = vld [vmem:[%s1 + $0x268] sm:$0xff]
  %v99 = vld [vmem:[%s1 + $0x270] sm:$0xff]
  %v100 = vld [vmem:[%s1 + $0x278] sm:$0xff]
  %v101 = vld [vmem:[%s1 + $0x280] sm:$0xff]
  %v102 = vld [vmem:[%s1 + $0x288] sm:$0xff]
  %v103 = vld [vmem:[%s1 + $0x290] sm:$0xff]
  %v104 = vld [vmem:[%s1 + $0x298] sm:$0xff]
  %v105 = vld [vmem:[%s1 + $0x2a0] sm:$0xff]
  %v106 = vld [vmem:[%s1 + $0x2a8] sm:$0xff]
  %v107 = vld [vmem:[%s1 + $0x2b0] sm:$0xff]
  %v108 = vld [vmem:[%s1 + $0x2b8] sm:$0xff]
  %v109 = vld [vmem:[%s1 + $0x2c0] sm:$0xff]
  %v110 = vld [vmem:[%s1 + $0x2c8] sm:$0xff]
  %v111 = vld [vmem:[%s1 + $0x2d0] sm:$0xff]
  %v112 = vld [vmem:[%s1 + $0x2d8] sm:$0xff]
  %v113 = vld [vmem:[%s1 + $0x2e0] sm:$0xff]
  %v114 = vld [vmem:[%s1 + $0x2e8] sm:$0xff]
  %v115 = vld [vmem:[%s1 + $0x2f0] sm:$0xff]
  %v116 = vld [vmem:[%s1 + $0x2f8] sm:$0xff]
  %v117 = vld [vmem:[%s1 + $0x300] sm:$0xff]
  %v118 = vld [vmem:[%s1 + $0x308] sm:$0xff]
  %v119 = vld [vmem:[%s1 + $0x310] sm:$0xff]
  %v120 = vld [vmem:[%s1 + $0x318] sm:$0xff]
  %v121 = vld [vmem:[%s1 + $0x320] sm:$0xff]
  %v122 = vld [vmem:[%s1 + $0x328] sm:$0xff]
  %v123 = vld [vmem:[%s1 + $0x330] sm:$0xff]
  %v124 = vld [vmem:[%s1 + $0x338] sm:$0xff]
  %v125 = vld [vmem:[%s1 + $0x340] sm:$0xff]
  %v126 = vld [vmem:[%s1 + $0x348] sm:$0xff]
  %v127 = vld [vmem:[%s1 + $0x350] sm:$0xff]
  %v128 = vld [vmem:[%s1 + $0x358] sm:$0xff]
  %v129 = vld [vmem:[%s1 + $0x360] sm:$0xff]
  %v130 = vld [vmem:[%s1 + $0x368] sm:$0xff]
  %v131 = vld [vmem:[%s1 + $0x370] sm:$0xff]
  %v132 = vld [vmem:[%s1 + $0x378] sm:$0xff]
  %v133 = vld [vmem:[%s1 + $0x380] sm:$0xff]
  %v134 = vld [vmem:[%s1 + $0x388] sm:$0xff]
  %v135 = vld [vmem:[%s1 + $0x390] sm:$0xff]
  %v136 = vld [vmem:[%s1 + $0x398] sm:$0xff]
  %v137 = vld [vmem:[%s1 + $0x3a0] sm:$0xff]
  %v138 = vld [vmem:[%s1 + $0x3a8] sm:$0xff]
  %v139 = vld [vmem:[%s1 + $0x3b0] sm:$0xff]
  %v140 = vld [vmem:[%s1 + $0x3b8] sm:$0xff]
  %v141 = vld [vmem:[%s1 + $0x3c0] sm:$0xff]
  %v142 = vld [vmem:[%s1 + $0x3c8] sm:$0xff]
  %v143 = vld [vmem:[%s1 + $0x3d0] sm:$0xff]
  %v144 = vld [vmem:[%s1 + $0x3d8] sm:$0xff]
  %v145 = vld [vmem:[%s1 + $0x3e0] sm:$0xff]
  %v146 = vld [vmem:[%s1 + $0x3e8] sm:$0xff]
  %v147 = vld [vmem:[%s1 + $0x3f0] sm:$0xff]
  %v148 = vld [vmem:[%s1 + $0x3f8] sm:$0xff]
  %v149 = vld [vmem:[%s2] sm:$0x1]
  %v151 = vlaneseq
  %v152 = vshrl.u32 %v151, 7
  %v153 = vsub.s32 0, %v152
  %v154 = vrot.slane %v149, %v153
  %v160 = vcombine.high %v17, %v17
  %v161 = vcombine.high %v18, %v18
  %v162 = vcombine.high %v19, %v19
  %v163 = vcombine.high %v20, %v20
  %168 = vmatprep.subr.mxu0 0.0
  %169 = vmatpush1.msra.mxu0 %v21
  %170 = vmatprep.subr.mxu0 0.0
  %171 = vmatpush1.msra.mxu0 %v22
  %172 = vmatprep.subr.mxu0 0.0
  %173 = vmatpush1.msra.mxu0 %v23
  %174 = vmatprep.subr.mxu0 0.0
  %175 = vmatpush1.msra.mxu0 %v24
  %176 = vmatprep.subr.mxu0 0.0
  %177 = vmatpush1.msra.mxu0 %v25
  %178 = vmatprep.subr.mxu0 0.0
  %179 = vmatpush1.msra.mxu0 %v26
  %180 = vmatprep.subr.mxu0 0.0
  %181 = vmatpush1.msra.mxu0 %v27
  %182 = vmatprep.subr.mxu0 0.0
  %183 = vmatpush1.msra.mxu0 %v28
  %184 = vmatprep.subr.mxu0 0.0
  %185 = vmatpush1.msra.mxu0 %v29
  %186 = vmatprep.subr.mxu0 0.0
  %187 = vmatpush1.msra.mxu0 %v30
  %188 = vmatprep.subr.mxu0 0.0
  %189 = vmatpush1.msra.mxu0 %v31
  %190 = vmatprep.subr.mxu0 0.0
  %191 = vmatpush1.msra.mxu0 %v32
  %192 = vmatprep.subr.mxu0 0.0
  %193 = vmatpush1.msra.mxu0 %v33
  %194 = vmatprep.subr.mxu0 0.0
  %195 = vmatpush1.msra.mxu0 %v34
  %196 = vmatprep.subr.mxu0 0.0
  %197 = vmatpush1.msra.mxu0 %v35
  %198 = vmatprep.subr.mxu0 0.0
  %199 = vmatpush1.msra.mxu0 %v36
  %200 = vmatprep.subr.mxu0 0.0
  %201 = vmatpush1.msra.mxu0 %v37
  %202 = vmatprep.subr.mxu0 0.0
  %203 = vmatpush1.msra.mxu0 %v38
  %204 = vmatprep.subr.mxu0 0.0
  %205 = vmatpush1.msra.mxu0 %v39
  %206 = vmatprep.subr.mxu0 0.0
  %207 = vmatpush1.msra.mxu0 %v40
  %208 = vmatprep.subr.mxu0 0.0
  %209 = vmatpush1.msra.mxu0 %v41
  %210 = vmatprep.subr.mxu0 0.0
  %211 = vmatpush1.msra.mxu0 %v42
  %212 = vmatprep.subr.mxu0 0.0
  %213 = vmatpush1.msra.mxu0 %v43
  %214 = vmatprep.subr.mxu0 0.0
  %215 = vmatpush1.msra.mxu0 %v44
  %216 = vmatprep.subr.mxu0 0.0
  %217 = vmatpush1.msra.mxu0 %v45
  %218 = vmatprep.subr.mxu0 0.0
  %219 = vmatpush1.msra.mxu0 %v46
  %220 = vmatprep.subr.mxu0 0.0
  %221 = vmatpush1.msra.mxu0 %v47
  %222 = vmatprep.subr.mxu0 0.0
  %223 = vmatpush1.msra.mxu0 %v48
  %224 = vmatprep.subr.mxu0 0.0
  %225 = vmatpush1.msra.mxu0 %v49
  %226 = vmatprep.subr.mxu0 0.0
  %227 = vmatpush1.msra.mxu0 %v50
  %228 = vmatprep.subr.mxu0 0.0
  %229 = vmatpush1.msra.mxu0 %v51
  %230 = vmatprep.subr.mxu0 0.0
  %231 = vmatpush1.msra.mxu0 %v52
  %232 = vmatprep.mubr.f32.mxu0 %v160
  %233 = vmatmul.mubr.f32.gmra.mrb[0].mxu0 %v17
  %v234 = vpop.f32.mrb[0].mxu0
  %v235 = vadd.f32 %v154, %v234
  %v236 = vpop.f32.mrb[0].mxu0
  %237 = vdwg.mxu0
  %238 = vmatprep.subr.mxu0 0.0
  %239 = vmatpush1.msra.mxu0 %v53
  %240 = vmatprep.subr.mxu0 0.0
  %241 = vmatpush1.msra.mxu0 %v54
  %242 = vmatprep.subr.mxu0 0.0
  %243 = vmatpush1.msra.mxu0 %v55
  %244 = vmatprep.subr.mxu0 0.0
  %245 = vmatpush1.msra.mxu0 %v56
  %246 = vmatprep.subr.mxu0 0.0
  %247 = vmatpush1.msra.mxu0 %v57
  %248 = vmatprep.subr.mxu0 0.0
  %249 = vmatpush1.msra.mxu0 %v58
  %250 = vmatprep.subr.mxu0 0.0
  %251 = vmatpush1.msra.mxu0 %v59
  %252 = vmatprep.subr.mxu0 0.0
  %253 = vmatpush1.msra.mxu0 %v60
  %254 = vmatprep.subr.mxu0 0.0
  %255 = vmatpush1.msra.mxu0 %v61
  %256 = vmatprep.subr.mxu0 0.0
  %257 = vmatpush1.msra.mxu0 %v62
  %258 = vmatprep.subr.mxu0 0.0
  %259 = vmatpush1.msra.mxu0 %v63
  %260 = vmatprep.subr.mxu0 0.0
  %261 = vmatpush1.msra.mxu0 %v64
  %262 = vmatprep.subr.mxu0 0.0
  %263 = vmatpush1.msra.mxu0 %v65
  %264 = vmatprep.subr.mxu0 0.0
  %265 = vmatpush1.msra.mxu0 %v66
  %266 = vmatprep.subr.mxu0 0.0
  %267 = vmatpush1.msra.mxu0 %v67
  %268 = vmatprep.subr.mxu0 0.0
  %269 = vmatpush1.msra.mxu0 %v68
  %270 = vmatprep.subr.mxu0 0.0
  %271 = vmatpush1.msra.mxu0 %v69
  %272 = vmatprep.subr.mxu0 0.0
  %273 = vmatpush1.msra.mxu0 %v70
  %274 = vmatprep.subr.mxu0 0.0
  %275 = vmatpush1.msra.mxu0 %v71
  %276 = vmatprep.subr.mxu0 0.0
  %277 = vmatpush1.msra.mxu0 %v72
  %278 = vmatprep.subr.mxu0 0.0
  %279 = vmatpush1.msra.mxu0 %v73
  %280 = vmatprep.subr.mxu0 0.0
  %281 = vmatpush1.msra.mxu0 %v74
  %282 = vmatprep.subr.mxu0 0.0
  %283 = vmatpush1.msra.mxu0 %v75
  %284 = vmatprep.subr.mxu0 0.0
  %285 = vmatpush1.msra.mxu0 %v76
  %286 = vmatprep.subr.mxu0 0.0
  %287 = vmatpush1.msra.mxu0 %v77
  %288 = vmatprep.subr.mxu0 0.0
  %289 = vmatpush1.msra.mxu0 %v78
  %290 = vmatprep.subr.mxu0 0.0
  %291 = vmatpush1.msra.mxu0 %v79
  %292 = vmatprep.subr.mxu0 0.0
  %293 = vmatpush1.msra.mxu0 %v80
  %294 = vmatprep.subr.mxu0 0.0
  %295 = vmatpush1.msra.mxu0 %v81
  %296 = vmatprep.subr.mxu0 0.0
  %297 = vmatpush1.msra.mxu0 %v82
  %298 = vmatprep.subr.mxu0 0.0
  %299 = vmatpush1.msra.mxu0 %v83
  %300 = vmatprep.subr.mxu0 0.0
  %301 = vmatpush1.msra.mxu0 %v84
  %302 = vmatprep.mubr.f32.mxu0 %v161
  %303 = vmatmul.mubr.f32.gmra.mrb[0].mxu0 %v18
  %v304 = vpop.f32.mrb[0].mxu0
  %v305 = vadd.f32 %v235, %v304
  %v306 = vpop.f32.mrb[0].mxu0
  %307 = vdwg.mxu0
  %308 = vmatprep.subr.mxu0 0.0
  %309 = vmatpush1.msra.mxu0 %v85
  %310 = vmatprep.subr.mxu0 0.0
  %311 = vmatpush1.msra.mxu0 %v86
  %312 = vmatprep.subr.mxu0 0.0
  %313 = vmatpush1.msra.mxu0 %v87
  %314 = vmatprep.subr.mxu0 0.0
  %315 = vmatpush1.msra.mxu0 %v88
  %316 = vmatprep.subr.mxu0 0.0
  %317 = vmatpush1.msra.mxu0 %v89
  %318 = vmatprep.subr.mxu0 0.0
  %319 = vmatpush1.msra.mxu0 %v90
  %320 = vmatprep.subr.mxu0 0.0
  %321 = vmatpush1.msra.mxu0 %v91
  %322 = vmatprep.subr.mxu0 0.0
  %323 = vmatpush1.msra.mxu0 %v92
  %324 = vmatprep.subr.mxu0 0.0
  %325 = vmatpush1.msra.mxu0 %v93
  %326 = vmatprep.subr.mxu0 0.0
  %327 = vmatpush1.msra.mxu0 %v94
  %328 = vmatprep.subr.mxu0 0.0
  %329 = vmatpush1.msra.mxu0 %v95
  %330 = vmatprep.subr.mxu0 0.0
  %331 = vmatpush1.msra.mxu0 %v96
  %332 = vmatprep.subr.mxu0 0.0
  %333 = vmatpush1.msra.mxu0 %v97
  %334 = vmatprep.subr.mxu0 0.0
  %335 = vmatpush1.msra.mxu0 %v98
  %336 = vmatprep.subr.mxu0 0.0
  %337 = vmatpush1.msra.mxu0 %v99
  %338 = vmatprep.subr.mxu0 0.0
  %339 = vmatpush1.msra.mxu0 %v100
  %340 = vmatprep.subr.mxu0 0.0
  %341 = vmatpush1.msra.mxu0 %v101
  %342 = vmatprep.subr.mxu0 0.0
  %343 = vmatpush1.msra.mxu0 %v102
  %344 = vmatprep.subr.mxu0 0.0
  %345 = vmatpush1.msra.mxu0 %v103
  %346 = vmatprep.subr.mxu0 0.0
  %347 = vmatpush1.msra.mxu0 %v104
  %348 = vmatprep.subr.mxu0 0.0
  %349 = vmatpush1.msra.mxu0 %v105
  %350 = vmatprep.subr.mxu0 0.0
  %351 = vmatpush1.msra.mxu0 %v106
  %352 = vmatprep.subr.mxu0 0.0
  %353 = vmatpush1.msra.mxu0 %v107
  %354 = vmatprep.subr.mxu0 0.0
  %355 = vmatpush1.msra.mxu0 %v108
  %356 = vmatprep.subr.mxu0 0.0
  %357 = vmatpush1.msra.mxu0 %v109
  %358 = vmatprep.subr.mxu0 0.0
  %359 = vmatpush1.msra.mxu0 %v110
  %360 = vmatprep.subr.mxu0 0.0
  %361 = vmatpush1.msra.mxu0 %v111
  %362 = vmatprep.subr.mxu0 0.0
  %363 = vmatpush1.msra.mxu0 %v112
  %364 = vmatprep.subr.mxu0 0.0
  %365 = vmatpush1.msra.mxu0 %v113
  %366 = vmatprep.subr.mxu0 0.0
  %367 = vmatpush1.msra.mxu0 %v114
  %368 = vmatprep.subr.mxu0 0.0
  %369 = vmatpush1.msra.mxu0 %v115
  %370 = vmatprep.subr.mxu0 0.0
  %371 = vmatpush1.msra.mxu0 %v116
  %372 = vmatprep.mubr.f32.mxu0 %v162
  %373 = vmatmul.mubr.f32.gmra.mrb[0].mxu0 %v19
  %v374 = vpop.f32.mrb[0].mxu0
  %v375 = vadd.f32 %v305, %v374
  %v376 = vpop.f32.mrb[0].mxu0
  %377 = vdwg.mxu0
  %378 = vmatprep.subr.mxu0 0.0
  %379 = vmatpush1.msra.mxu0 %v117
  %380 = vmatprep.subr.mxu0 0.0
  %381 = vmatpush1.msra.mxu0 %v118
  %382 = vmatprep.subr.mxu0 0.0
  %383 = vmatpush1.msra.mxu0 %v119
  %384 = vmatprep.subr.mxu0 0.0
  %385 = vmatpush1.msra.mxu0 %v120
  %386 = vmatprep.subr.mxu0 0.0
  %387 = vmatpush1.msra.mxu0 %v121
  %388 = vmatprep.subr.mxu0 0.0
  %389 = vmatpush1.msra.mxu0 %v122
  %390 = vmatprep.subr.mxu0 0.0
  %391 = vmatpush1.msra.mxu0 %v123
  %392 = vmatprep.subr.mxu0 0.0
  %393 = vmatpush1.msra.mxu0 %v124
  %394 = vmatprep.subr.mxu0 0.0
  %395 = vmatpush1.msra.mxu0 %v125
  %396 = vmatprep.subr.mxu0 0.0
  %397 = vmatpush1.msra.mxu0 %v126
  %398 = vmatprep.subr.mxu0 0.0
  %399 = vmatpush1.msra.mxu0 %v127
  %400 = vmatprep.subr.mxu0 0.0
  %401 = vmatpush1.msra.mxu0 %v128
  %402 = vmatprep.subr.mxu0 0.0
  %403 = vmatpush1.msra.mxu0 %v129
  %404 = vmatprep.subr.mxu0 0.0
  %405 = vmatpush1.msra.mxu0 %v130
  %406 = vmatprep.subr.mxu0 0.0
  %407 = vmatpush1.msra.mxu0 %v131
  %408 = vmatprep.subr.mxu0 0.0
  %409 = vmatpush1.msra.mxu0 %v132
  %410 = vmatprep.subr.mxu0 0.0
  %411 = vmatpush1.msra.mxu0 %v133
  %412 = vmatprep.subr.mxu0 0.0
  %413 = vmatpush1.msra.mxu0 %v134
  %414 = vmatprep.subr.mxu0 0.0
  %415 = vmatpush1.msra.mxu0 %v135
  %416 = vmatprep.subr.mxu0 0.0
  %417 = vmatpush1.msra.mxu0 %v136
  %418 = vmatprep.subr.mxu0 0.0
  %419 = vmatpush1.msra.mxu0 %v137
  %420 = vmatprep.subr.mxu0 0.0
  %421 = vmatpush1.msra.mxu0 %v138
  %422 = vmatprep.subr.mxu0 0.0
  %423 = vmatpush1.msra.mxu0 %v139
  %424 = vmatprep.subr.mxu0 0.0
  %425 = vmatpush1.msra.mxu0 %v140
  %426 = vmatprep.subr.mxu0 0.0
  %427 = vmatpush1.msra.mxu0 %v141
  %428 = vmatprep.subr.mxu0 0.0
  %429 = vmatpush1.msra.mxu0 %v142
  %430 = vmatprep.subr.mxu0 0.0
  %431 = vmatpush1.msra.mxu0 %v143
  %432 = vmatprep.subr.mxu0 0.0
  %433 = vmatpush1.msra.mxu0 %v144
  %434 = vmatprep.subr.mxu0 0.0
  %435 = vmatpush1.msra.mxu0 %v145
  %436 = vmatprep.subr.mxu0 0.0
  %437 = vmatpush1.msra.mxu0 %v146
  %438 = vmatprep.subr.mxu0 0.0
  %439 = vmatpush1.msra.mxu0 %v147
  %440 = vmatprep.subr.mxu0 0.0
  %441 = vmatpush1.msra.mxu0 %v148
  %442 = vmatprep.mubr.f32.mxu0 %v163
  %443 = vmatmul.mubr.f32.gmra.mrb[0].mxu0 %v20
  %v444 = vpop.f32.mrb[0].mxu0
  %v445 = vadd.f32 %v375, %v444
  %v446 = vpop.f32.mrb[0].mxu0
  %447 = vdwg.mxu0
  %vm448 = vcmp.ge.f32.partialorder %v445, 0.0
  %v449 = vmul.f32 %v445, 0.2
  %v450 = vsel %vm448, %v445, %v449
  %v451 = vmul.f32 %v450, 1.4142135
  %v452 = vld [vmem:[%s3] sm:$0xf]
  %v453 = vmul.f32 %v451, %v452
  %vm454 = vcmask 257024
  %v455 = vsel %vm454, %v453, 0.0
  %456 = vadd.xlane.f32.xlu0 %v455
  %v457 = vpop.xlane.xlu0 %456
  %v458 = vmul.f32 %v457, 0.17677669
  %vm459 = vcmask 3072
  %460 = vst.msk [vmem:[%s4] sm:$0xf] %vm459, %v458
  // Predicated region
  $region18: #{encoder_epilogue_forward.3} parent=0 // pred_check
    _
  $region19: #{encoder_epilogue_forward.3} parent=0 // pred_check_branch
    %462 = sbr.rel (0) target = $region21
  $region20: #{encoder_epilogue_forward.3} parent=0 // pred_region
    _
  $region21: #{encoder_epilogue_forward.3} parent=0 // pred_fallthru
    _
  // Predicated region
  $region22: #{encoder_epilogue_forward.3} parent=0 // pred_check
    _
  $region23: #{encoder_epilogue_forward.3} parent=0 // pred_check_branch
    %464 = sbr.rel (0) target = $region25
  $region24: #{encoder_epilogue_forward.3} parent=0 // pred_region
    _
  $region25: #{encoder_epilogue_forward.3} parent=0 // pred_fallthru
    _

// kernel: encoder_epilogue_forward.2
$region0: #{encoder_epilogue_forward.2}
  #allocation0 [shape = 'u32[]', space=smem, size = 0x4, offset = 0x4, fixed_abs, tag = 'smem constant byte address 0x4 - core index']
  #allocation1 [shape = 'u32[144,128]{1,0:T(1,128)}', space=vmem, size = 0x12000, scoped, tag = 'internal scratch']
  %s0 = inlined_call_operand.vmem [shape: f32[256,16], index: 0, kind: input, shape index: {}]
  %s1 = inlined_call_operand.vmem [shape: f32[256,144], index: 1, kind: input, shape index: {}]
  %s2 = inlined_call_operand.vmem [shape: f32[144,16], index: 2, kind: input, shape index: {}]
  %s3 = inlined_call_operand.vmem [shape: f32[1,16], index: 3, kind: input, shape index: {}]
  %s4 = inlined_call_operand.vmem [shape: f32[64,16], index: 4, kind: input, shape index: {}]
  %s5 = inlined_call_operand.vmem [shape: f32[256,16], index: 5, kind: output, shape index: {}]
  %s6 = sld [smem:[#allocation0]]
  $region30: #{encoder_epilogue_forward.2} parent=0
    _
  %s8 = ssub.s32 1, %s6
  %s9 = scalar_select 0, %s8, %s6
  // Predicated region
  $region2: #{encoder_epilogue_forward.2} parent=0 // pred_check
    _
  $region3: #{encoder_epilogue_forward.2} parent=0 // pred_check_branch
    %11 = sbr.rel (0) target = $region5
  $region4: #{encoder_epilogue_forward.2} parent=0 // pred_region
    _
  $region5: #{encoder_epilogue_forward.2} parent=0 // pred_fallthru
    _
  // Predicated region
  $region6: #{encoder_epilogue_forward.2} parent=0 // pred_check
    _
  $region7: #{encoder_epilogue_forward.2} parent=0 // pred_check_branch
    %13 = sbr.rel (0) target = $region9
  $region8: #{encoder_epilogue_forward.2} parent=0 // pred_region
    _
  $region9: #{encoder_epilogue_forward.2} parent=0 // pred_fallthru
    _
  // Predicated region
  $region10: #{encoder_epilogue_forward.2} parent=0 // pred_check
    _
  $region11: #{encoder_epilogue_forward.2} parent=0 // pred_check_branch
    %15 = sbr.rel (0) target = $region13
  $region12: #{encoder_epilogue_forward.2} parent=0 // pred_region
    _
  $region13: #{encoder_epilogue_forward.2} parent=0 // pred_fallthru
    _
  // Predicated region
  $region14: #{encoder_epilogue_forward.2} parent=0 // pred_check
    _
  $region15: #{encoder_epilogue_forward.2} parent=0 // pred_check_branch
    %17 = sbr.rel (0) target = $region17
  $region16: #{encoder_epilogue_forward.2} parent=0 // pred_region
    _
  $region17: #{encoder_epilogue_forward.2} parent=0 // pred_fallthru
    _
  // Predicated region
  $region18: #{encoder_epilogue_forward.2} parent=0 // pred_check
    _
  $region19: #{encoder_epilogue_forward.2} parent=0 // pred_check_branch
    %19 = sbr.rel (0) target = $region21
  $region20: #{encoder_epilogue_forward.2} parent=0 // pred_region
    _
  $region21: #{encoder_epilogue_forward.2} parent=0 // pred_fallthru
    _
  %v20 = vld [vmem:[%s0] sm:$0xff]
  %v21 = vld [vmem:[%s0 + $0x8] sm:$0xff]
  %v22 = vld [vmem:[%s0 + $0x10] sm:$0xff]
  %v23 = vld [vmem:[%s0 + $0x18] sm:$0xff]
  %v24 = vld [vmem:[%s0 + $0x20] sm:$0xff]
  %v25 = vld [vmem:[%s0 + $0x28] sm:$0xff]
  %v26 = vld [vmem:[%s0 + $0x30] sm:$0xff]
  %v27 = vld [vmem:[%s0 + $0x38] sm:$0xff]
  %v28 = vld [vmem:[%s0 + $0x40] sm:$0xff]
  %v29 = vld [vmem:[%s0 + $0x48] sm:$0xff]
  %v30 = vld [vmem:[%s0 + $0x50] sm:$0xff]
  %v31 = vld [vmem:[%s0 + $0x58] sm:$0xff]
  %v32 = vld [vmem:[%s0 + $0x60] sm:$0xff]
  %v33 = vld [vmem:[%s0 + $0x68] sm:$0xff]
  %v34 = vld [vmem:[%s0 + $0x70] sm:$0xff]
  %v35 = vld [vmem:[%s0 + $0x78] sm:$0xff]
  %v36 = vld [vmem:[%s0 + $0x80] sm:$0xff]
  %v37 = vld [vmem:[%s0 + $0x88] sm:$0xff]
  %v38 = vld [vmem:[%s0 + $0x90] sm:$0xff]
  %v39 = vld [vmem:[%s0 + $0x98] sm:$0xff]
  %v40 = vld [vmem:[%s0 + $0xa0] sm:$0xff]
  %v41 = vld [vmem:[%s0 + $0xa8] sm:$0xff]
  %v42 = vld [vmem:[%s0 + $0xb0] sm:$0xff]
  %v43 = vld [vmem:[%s0 + $0xb8] sm:$0xff]
  %v44 = vld [vmem:[%s0 + $0xc0] sm:$0xff]
  %v45 = vld [vmem:[%s0 + $0xc8] sm:$0xff]
  %v46 = vld [vmem:[%s0 + $0xd0] sm:$0xff]
  %v47 = vld [vmem:[%s0 + $0xd8] sm:$0xff]
  %v48 = vld [vmem:[%s0 + $0xe0] sm:$0xff]
  %v49 = vld [vmem:[%s0 + $0xe8] sm:$0xff]
  %v50 = vld [vmem:[%s0 + $0xf0] sm:$0xff]
  %v51 = vld [vmem:[%s0 + $0xf8] sm:$0xff]
  %vm52 = vcmask 130048
  %v53 = vsel %vm52, %v20, 0.0
  %v54 = vsel %vm52, %v28, 0.0
  %v55 = vadd.f32 %v53, %v54
  %v56 = vsel %vm52, %v36, 0.0
  %v57 = vadd.f32 %v55, %v56
  %v58 = vsel %vm52, %v44, 0.0
  %v59 = vadd.f32 %v57, %v58
  %v60 = vsel %vm52, %v21, 0.0
  %v61 = vsel %vm52, %v29, 0.0
  %v62 = vadd.f32 %v60, %v61
  %v63 = vsel %vm52, %v37, 0.0
  %v64 = vadd.f32 %v62, %v63
  %v65 = vsel %vm52, %v45, 0.0
  %v66 = vadd.f32 %v64, %v65
  %v67 = vsel %vm52, %v22, 0.0
  %v68 = vsel %vm52, %v30, 0.0
  %v69 = vadd.f32 %v67, %v68
  %v70 = vsel %vm52, %v38, 0.0
  %v71 = vadd.f32 %v69, %v70
  %v72 = vsel %vm52, %v46, 0.0
  %v73 = vadd.f32 %v71, %v72
  %v74 = vsel %vm52, %v23, 0.0
  %v75 = vsel %vm52, %v31, 0.0
  %v76 = vadd.f32 %v74, %v75
  %v77 = vsel %vm52, %v39, 0.0
  %v78 = vadd.f32 %v76, %v77
  %v79 = vsel %vm52, %v47, 0.0
  %v80 = vadd.f32 %v78, %v79
  %v81 = vsel %vm52, %v24, 0.0
  %v82 = vsel %vm52, %v32, 0.0
  %v83 = vadd.f32 %v81, %v82
  %v84 = vsel %vm52, %v40, 0.0
  %v85 = vadd.f32 %v83, %v84
  %v86 = vsel %vm52, %v48, 0.0
  %v87 = vadd.f32 %v85, %v86
  %v88 = vsel %vm52, %v25, 0.0
  %v89 = vsel %vm52, %v33, 0.0
  %v90 = vadd.f32 %v88, %v89
  %v91 = vsel %vm52, %v41, 0.0
  %v92 = vadd.f32 %v90, %v91
  %v93 = vsel %vm52, %v49, 0.0
  %v94 = vadd.f32 %v92, %v93
  %v95 = vsel %vm52, %v26, 0.0
  %v96 = vsel %vm52, %v34, 0.0
  %v97 = vadd.f32 %v95, %v96
  %v98 = vsel %vm52, %v42, 0.0
  %v99 = vadd.f32 %v97, %v98
  %v100 = vsel %vm52, %v50, 0.0
  %v101 = vadd.f32 %v99, %v100
  %v102 = vsel %vm52, %v27, 0.0
  %v103 = vsel %vm52, %v35, 0.0
  %v104 = vadd.f32 %v102, %v103
  %v105 = vsel %vm52, %v43, 0.0
  %v106 = vadd.f32 %v104, %v105
  %v107 = vsel %vm52, %v51, 0.0
  %v108 = vadd.f32 %v106, %v107
  %v109 = vrcp.pop 4.0
  %v110 = vmul.f32 %v59, %v109
  %v111 = vmul.f32 %v66, %v109
  %v112 = vmul.f32 %v73, %v109
  %v113 = vmul.f32 %v80, %v109
  %v114 = vmul.f32 %v87, %v109
  %v115 = vmul.f32 %v94, %v109
  %v116 = vmul.f32 %v101, %v109
  %v117 = vmul.f32 %v108, %v109
  %v118 = vsub.f32 %v20, %v110
  %v119 = vsub.f32 %v21, %v111
  %v120 = vsub.f32 %v22, %v112
  %v121 = vsub.f32 %v23, %v113
  %v122 = vsub.f32 %v24, %v114
  %v123 = vsub.f32 %v25, %v115
  %v124 = vsub.f32 %v26, %v116
  %v125 = vsub.f32 %v27, %v117
  %v126 = vsub.f32 %v28, %v110
  %v127 = vsub.f32 %v29, %v111
  %v128 = vsub.f32 %v30, %v112
  %v129 = vsub.f32 %v31, %v113
  %v130 = vsub.f32 %v32, %v114
  %v131 = vsub.f32 %v33, %v115
  %v132 = vsub.f32 %v34, %v116
  %v133 = vsub.f32 %v35, %v117
  %v134 = vsub.f32 %v36, %v110
  %v135 = vsub.f32 %v37, %v111
  %v136 = vsub.f32 %v38, %v112
  %v137 = vsub.f32 %v39, %v113
  %v138 = vsub.f32 %v40, %v114
  %v139 = vsub.f32 %v41, %v115
  %v140 = vsub.f32 %v42, %v116
  %v141 = vsub.f32 %v43, %v117
  %v142 = vsub.f32 %v44, %v110
  %v143 = vsub.f32 %v45, %v111
  %v144 = vsub.f32 %v46, %v112
  %v145 = vsub.f32 %v47, %v113
  %v146 = vsub.f32 %v48, %v114
  %v147 = vsub.f32 %v49, %v115
  %v148 = vsub.f32 %v50, %v116
  %v149 = vsub.f32 %v51, %v117
  %v150 = vmul.f32 %v118, %v118
  %v151 = vmul.f32 %v119, %v119
  %v152 = vmul.f32 %v120, %v120
  %v153 = vmul.f32 %v121, %v121
  %v154 = vmul.f32 %v122, %v122
  %v155 = vmul.f32 %v123, %v123
  %v156 = vmul.f32 %v124, %v124
  %v157 = vmul.f32 %v125, %v125
  %v158 = vmul.f32 %v126, %v126
  %v159 = vmul.f32 %v127, %v127
  %v160 = vmul.f32 %v128, %v128
  %v161 = vmul.f32 %v129, %v129
  %v162 = vmul.f32 %v130, %v130
  %v163 = vmul.f32 %v131, %v131
  %v164 = vmul.f32 %v132, %v132
  %v165 = vmul.f32 %v133, %v133
  %v166 = vmul.f32 %v134, %v134
  %v167 = vmul.f32 %v135, %v135
  %v168 = vmul.f32 %v136, %v136
  %v169 = vmul.f32 %v137, %v137
  %v170 = vmul.f32 %v138, %v138
  %v171 = vmul.f32 %v139, %v139
  %v172 = vmul.f32 %v140, %v140
  %v173 = vmul.f32 %v141, %v141
  %v174 = vmul.f32 %v142, %v142
  %v175 = vmul.f32 %v143, %v143
  %v176 = vmul.f32 %v144, %v144
  %v177 = vmul.f32 %v145, %v145
  %v178 = vmul.f32 %v146, %v146
  %v179 = vmul.f32 %v147, %v147
  %v180 = vmul.f32 %v148, %v148
  %v181 = vmul.f32 %v149, %v149
  %v182 = vsel %vm52, %v150, 0.0
  %v183 = vsel %vm52, %v158, 0.0
  %v184 = vadd.f32 %v182, %v183
  %v185 = vsel %vm52, %v166, 0.0
  %v186 = vadd.f32 %v184, %v185
  %v187 = vsel %vm52, %v174, 0.0
  %v188 = vadd.f32 %v186, %v187
  %v189 = vsel %vm52, %v151, 0.0
  %v190 = vsel %vm52, %v159, 0.0
  %v191 = vadd.f32 %v189, %v190
  %v192 = vsel %vm52, %v167, 0.0
  %v193 = vadd.f32 %v191, %v192
  %v194 = vsel %vm52, %v175, 0.0
  %v195 = vadd.f32 %v193, %v194
  %v196 = vsel %vm52, %v152, 0.0
  %v197 = vsel %vm52, %v160, 0.0
  %v198 = vadd.f32 %v196, %v197
  %v199 = vsel %vm52, %v168, 0.0
  %v200 = vadd.f32 %v198, %v199
  %v201 = vsel %vm52, %v176, 0.0
  %v202 = vadd.f32 %v200, %v201
  %v203 = vsel %vm52, %v153, 0.0
  %v204 = vsel %vm52, %v161, 0.0
  %v205 = vadd.f32 %v203, %v204
  %v206 = vsel %vm52, %v169, 0.0
  %v207 = vadd.f32 %v205, %v206
  %v208 = vsel %vm52, %v177, 0.0
  %v209 = vadd.f32 %v207, %v208
  %v210 = vsel %vm52, %v154, 0.0
  %v211 = vsel %vm52, %v162, 0.0
  %v212 = vadd.f32 %v210, %v211
  %v213 = vsel %vm52, %v170, 0.0
  %v214 = vadd.f32 %v212, %v213
  %v215 = vsel %vm52, %v178, 0.0
  %v216 = vadd.f32 %v214, %v215
  %v217 = vsel %vm52, %v155, 0.0
  %v218 = vsel %vm52, %v163, 0.0
  %v219 = vadd.f32 %v217, %v218
  %v220 = vsel %vm52, %v171, 0.0
  %v221 = vadd.f32 %v219, %v220
  %v222 = vsel %vm52, %v179, 0.0
  %v223 = vadd.f32 %v221, %v222
  %v224 = vsel %vm52, %v156, 0.0
  %v225 = vsel %vm52, %v164, 0.0
  %v226 = vadd.f32 %v224, %v225
  %v227 = vsel %vm52, %v172, 0.0
  %v228 = vadd.f32 %v226, %v227
  %v229 = vsel %vm52, %v180, 0.0
  %v230 = vadd.f32 %v228, %v229
  %v231 = vsel %vm52, %v157, 0.0
  %v232 = vsel %vm52, %v165, 0.0
  %v233 = vadd.f32 %v231, %v232
  %v234 = vsel %vm52, %v173, 0.0
  %v235 = vadd.f32 %v233, %v234
  %v236 = vsel %vm52, %v181, 0.0
  %v237 = vadd.f32 %v235, %v236
  %v238 = vmul.f32 %v188, %v109
  %v239 = vmul.f32 %v195, %v109
  %v240 = vmul.f32 %v202, %v109
  %v241 = vmul.f32 %v209, %v109
  %v242 = vmul.f32 %v216, %v109
  %v243 = vmul.f32 %v223, %v109
  %v244 = vmul.f32 %v230, %v109
  %v245 = vmul.f32 %v237, %v109
  %v246 = vadd.f32 %v238, 1e-08
  %v247 = vadd.f32 %v239, 1e-08
  %v248 = vadd.f32 %v240, 1e-08
  %v249 = vadd.f32 %v241, 1e-08
  %v250 = vadd.f32 %v242, 1e-08
  %v251 = vadd.f32 %v243, 1e-08
  %v252 = vadd.f32 %v244, 1e-08
  %v253 = vadd.f32 %v245, 1e-08
  %v254 = vrsqrt.pop %v246
  %v255 = vmul.f32 %v246, %v254
  %vm256 = vcmp.eq.f32.partialorder %v246, inf
  %v257 = vsel %vm256, %v246, %v255
  %vm258 = vcmp.eq.f32.partialorder %v246, 0.0
  %v259 = vand.u32 %v246, 2147483648
  %v260 = vsel %vm258, %v259, %v257
  %v261 = vrsqrt.pop %v247
  %v262 = vmul.f32 %v247, %v261
  %vm263 = vcmp.eq.f32.partialorder %v247, inf
  %v264 = vsel %vm263, %v247, %v262
  %vm265 = vcmp.eq.f32.partialorder %v247, 0.0
  %v266 = vand.u32 %v247, 2147483648
  %v267 = vsel %vm265, %v266, %v264
  %v268 = vrsqrt.pop %v248
  %v269 = vmul.f32 %v248, %v268
  %vm270 = vcmp.eq.f32.partialorder %v248, inf
  %v271 = vsel %vm270, %v248, %v269
  %vm272 = vcmp.eq.f32.partialorder %v248, 0.0
  %v273 = vand.u32 %v248, 2147483648
  %v274 = vsel %vm272, %v273, %v271
  %v275 = vrsqrt.pop %v249
  %v276 = vmul.f32 %v249, %v275
  %vm277 = vcmp.eq.f32.partialorder %v249, inf
  %v278 = vsel %vm277, %v249, %v276
  %vm279 = vcmp.eq.f32.partialorder %v249, 0.0
  %v280 = vand.u32 %v249, 2147483648
  %v281 = vsel %vm279, %v280, %v278
  %v282 = vrsqrt.pop %v250
  %v283 = vmul.f32 %v250, %v282
  %vm284 = vcmp.eq.f32.partialorder %v250, inf
  %v285 = vsel %vm284, %v250, %v283
  %vm286 = vcmp.eq.f32.partialorder %v250, 0.0
  %v287 = vand.u32 %v250, 2147483648
  %v288 = vsel %vm286, %v287, %v285
  %v289 = vrsqrt.pop %v251
  %v290 = vmul.f32 %v251, %v289
  %vm291 = vcmp.eq.f32.partialorder %v251, inf
  %v292 = vsel %vm291, %v251, %v290
  %vm293 = vcmp.eq.f32.partialorder %v251, 0.0
  %v294 = vand.u32 %v251, 2147483648
  %v295 = vsel %vm293, %v294, %v292
  %v296 = vrsqrt.pop %v252
  %v297 = vmul.f32 %v252, %v296
  %vm298 = vcmp.eq.f32.partialorder %v252, inf
  %v299 = vsel %vm298, %v252, %v297
  %vm300 = vcmp.eq.f32.partialorder %v252, 0.0
  %v301 = vand.u32 %v252, 2147483648
  %v302 = vsel %vm300, %v301, %v299
  %v303 = vrsqrt.pop %v253
  %v304 = vmul.f32 %v253, %v303
  %vm305 = vcmp.eq.f32.partialorder %v253, inf
  %v306 = vsel %vm305, %v253, %v304
  %vm307 = vcmp.eq.f32.partialorder %v253, 0.0
  %v308 = vand.u32 %v253, 2147483648
  %v309 = vsel %vm307, %v308, %v306
  %v310 = vsel %vm52, %v260, 0.0
  %311 = vadd.xlane.f32.xlu0 %v310
  %v312 = vpop.xlane.xlu0 %311
  %v313 = vsel %vm52, %v267, 0.0
  %314 = vadd.xlane.f32.xlu0 %v313
  %v315 = vpop.xlane.xlu0 %314
  %v316 = vsel %vm52, %v274, 0.0
  %317 = vadd.xlane.f32.xlu0 %v316
  %v318 = vpop.xlane.xlu0 %317
  %v319 = vsel %vm52, %v281, 0.0
  %320 = vadd.xlane.f32.xlu0 %v319
  %v321 = vpop.xlane.xlu0 %320
  %v322 = vsel %vm52, %v288, 0.0
  %323 = vadd.xlane.f32.xlu0 %v322
  %v324 = vpop.xlane.xlu0 %323
  %v325 = vsel %vm52, %v295, 0.0
  %326 = vadd.xlane.f32.xlu0 %v325
  %v327 = vpop.xlane.xlu0 %326
  %v328 = vsel %vm52, %v302, 0.0
  %329 = vadd.xlane.f32.xlu0 %v328
  %v330 = vpop.xlane.xlu0 %329
  %v331 = vsel %vm52, %v309, 0.0
  %332 = vadd.xlane.f32.xlu0 %v331
  %v333 = vpop.xlane.xlu0 %332
  %v334 = vrcp.pop 16.0
  %v335 = vmul.f32 %v312, %v334
  %v336 = vmul.f32 %v315, %v334
  %v337 = vmul.f32 %v318, %v334
  %v338 = vmul.f32 %v321, %v334
  %v339 = vmul.f32 %v324, %v334
  %v340 = vmul.f32 %v327, %v334
  %v341 = vmul.f32 %v330, %v334
  %v342 = vmul.f32 %v333, %v334
  %v343 = vadd.f32 %v335, %v336
  %v344 = vadd.f32 %v343, %v337
  %v345 = vadd.f32 %v344, %v338
  %v346 = vadd.f32 %v345, %v339
  %v347 = vadd.f32 %v346, %v340
  %v348 = vadd.f32 %v347, %v341
  %v349 = vadd.f32 %v348, %v342
  %v350 = vrot.slane %v349, 4
  %v351 = vadd.f32 %v349, %v350
  %v352 = vrot.slane %v351, 2
  %v353 = vadd.f32 %v351, %v352
  %v354 = vrot.slane %v353, 1
  %v355 = vadd.f32 %v353, %v354
  %v356 = vrcp.pop 64.0
  %v357 = vmul.f32 %v355, %v356
  %v358 = vld [vmem:[%s1] sm:$0xff]
  %v359 = vld [vmem:[%s1 + $0x8] sm:$0xff]
  %v360 = vld [vmem:[%s1 + $0x10] sm:$0xff]
  %v361 = vld [vmem:[%s1 + $0x18] sm:$0xff]
  %v362 = vld [vmem:[%s1 + $0x20] sm:$0xff]
  %v363 = vld [vmem:[%s1 + $0x28] sm:$0xff]
  %v364 = vld [vmem:[%s1 + $0x30] sm:$0xff]
  %v365 = vld [vmem:[%s1 + $0x38] sm:$0xff]
  %v366 = vld [vmem:[%s1 + $0x40] sm:$0xff]
  %v367 = vld [vmem:[%s1 + $0x48] sm:$0xff]
  %v368 = vld [vmem:[%s1 + $0x50] sm:$0xff]
  %v369 = vld [vmem:[%s1 + $0x58] sm:$0xff]
  %v370 = vld [vmem:[%s1 + $0x60] sm:$0xff]
  %v371 = vld [vmem:[%s1 + $0x68] sm:$0xff]
  %v372 = vld [vmem:[%s1 + $0x70] sm:$0xff]
  %v373 = vld [vmem:[%s1 + $0x78] sm:$0xff]
  %v374 = vld [vmem:[%s1 + $0x80] sm:$0xff]
  %v375 = vld [vmem:[%s1 + $0x88] sm:$0xff]
  %v376 = vld [vmem:[%s1 + $0x90] sm:$0xff]
  %v377 = vld [vmem:[%s1 + $0x98] sm:$0xff]
  %v378 = vld [vmem:[%s1 + $0xa0] sm:$0xff]
  %v379 = vld [vmem:[%s1 + $0xa8] sm:$0xff]
  %v380 = vld [vmem:[%s1 + $0xb0] sm:$0xff]
  %v381 = vld [vmem:[%s1 + $0xb8] sm:$0xff]
  %v382 = vld [vmem:[%s1 + $0xc0] sm:$0xff]
  %v383 = vld [vmem:[%s1 + $0xc8] sm:$0xff]
  %v384 = vld [vmem:[%s1 + $0xd0] sm:$0xff]
  %v385 = vld [vmem:[%s1 + $0xd8] sm:$0xff]
  %v386 = vld [vmem:[%s1 + $0xe0] sm:$0xff]
  %v387 = vld [vmem:[%s1 + $0xe8] sm:$0xff]
  %v388 = vld [vmem:[%s1 + $0xf0] sm:$0xff]
  %v389 = vld [vmem:[%s1 + $0xf8] sm:$0xff]
  %v390 = vld [vmem:[%s1 + $0x100] sm:$0xff]
  %v391 = vld [vmem:[%s1 + $0x108] sm:$0xff]
  %v392 = vld [vmem:[%s1 + $0x110] sm:$0xff]
  %v393 = vld [vmem:[%s1 + $0x118] sm:$0xff]
  %v394 = vld [vmem:[%s1 + $0x120] sm:$0xff]
  %v395 = vld [vmem:[%s1 + $0x128] sm:$0xff]
  %v396 = vld [vmem:[%s1 + $0x130] sm:$0xff]
  %v397 = vld [vmem:[%s1 + $0x138] sm:$0xff]
  %v398 = vld [vmem:[%s1 + $0x140] sm:$0xff]
  %v399 = vld [vmem:[%s1 + $0x148] sm:$0xff]
  %v400 = vld [vmem:[%s1 + $0x150] sm:$0xff]
  %v401 = vld [vmem:[%s1 + $0x158] sm:$0xff]
  %v402 = vld [vmem:[%s1 + $0x160] sm:$0xff]
  %v403 = vld [vmem:[%s1 + $0x168] sm:$0xff]
  %v404 = vld [vmem:[%s1 + $0x170] sm:$0xff]
  %v405 = vld [vmem:[%s1 + $0x178] sm:$0xff]
  %v406 = vld [vmem:[%s1 + $0x180] sm:$0xff]
  %v407 = vld [vmem:[%s1 + $0x188] sm:$0xff]
  %v408 = vld [vmem:[%s1 + $0x190] sm:$0xff]
  %v409 = vld [vmem:[%s1 + $0x198] sm:$0xff]
  %v410 = vld [vmem:[%s1 + $0x1a0] sm:$0xff]
  %v411 = vld [vmem:[%s1 + $0x1a8] sm:$0xff]
  %v412 = vld [vmem:[%s1 + $0x1b0] sm:$0xff]
  %v413 = vld [vmem:[%s1 + $0x1b8] sm:$0xff]
  %v414 = vld [vmem:[%s1 + $0x1c0] sm:$0xff]
  %v415 = vld [vmem:[%s1 + $0x1c8] sm:$0xff]
  %v416 = vld [vmem:[%s1 + $0x1d0] sm:$0xff]
  %v417 = vld [vmem:[%s1 + $0x1d8] sm:$0xff]
  %v418 = vld [vmem:[%s1 + $0x1e0] sm:$0xff]
  %v419 = vld [vmem:[%s1 + $0x1e8] sm:$0xff]
  %v420 = vld [vmem:[%s1 + $0x1f0] sm:$0xff]
  %v421 = vld [vmem:[%s1 + $0x1f8] sm:$0xff]
  %v422 = vld [vmem:[%s2] sm:$0xff]
  %v423 = vld [vmem:[%s2 + $0x8] sm:$0xff]
  %v424 = vld [vmem:[%s2 + $0x10] sm:$0xff]
  %v425 = vld [vmem:[%s2 + $0x18] sm:$0xff]
  %v426 = vld [vmem:[%s2 + $0x20] sm:$0xff]
  %v427 = vld [vmem:[%s2 + $0x28] sm:$0xff]
  %v428 = vld [vmem:[%s2 + $0x30] sm:$0xff]
  %v429 = vld [vmem:[%s2 + $0x38] sm:$0xff]
  %v430 = vld [vmem:[%s2 + $0x40] sm:$0xff]
  %v431 = vld [vmem:[%s2 + $0x48] sm:$0xff]
  %v432 = vld [vmem:[%s2 + $0x50] sm:$0xff]
  %v433 = vld [vmem:[%s2 + $0x58] sm:$0xff]
  %v434 = vld [vmem:[%s2 + $0x60] sm:$0xff]
  %v435 = vld [vmem:[%s2 + $0x68] sm:$0xff]
  %v436 = vld [vmem:[%s2 + $0x70] sm:$0xff]
  %v437 = vld [vmem:[%s2 + $0x78] sm:$0xff]
  %v438 = vld [vmem:[%s2 + $0x80] sm:$0xff]
  %v439 = vld [vmem:[%s2 + $0x88] sm:$0xff]
  %v441 = vsel %vm52, %v359, 0
  %v444 = vsel %vm52, %v361, 0
  %v447 = vsel %vm52, %v363, 0
  %v450 = vsel %vm52, %v365, 0
  %v453 = vsel %vm52, %v367, 0
  %v456 = vsel %vm52, %v369, 0
  %v459 = vsel %vm52, %v371, 0
  %v462 = vsel %vm52, %v373, 0
  %v465 = vsel %vm52, %v375, 0
  %v468 = vsel %vm52, %v377, 0
  %v471 = vsel %vm52, %v379, 0
  %v474 = vsel %vm52, %v381, 0
  %v477 = vsel %vm52, %v383, 0
  %v480 = vsel %vm52, %v385, 0
  %v483 = vsel %vm52, %v387, 0
  %v486 = vsel %vm52, %v389, 0
  %v489 = vsel %vm52, %v391, 0
  %v492 = vsel %vm52, %v393, 0
  %v495 = vsel %vm52, %v395, 0
  %v498 = vsel %vm52, %v397, 0
  %v501 = vsel %vm52, %v399, 0
  %v504 = vsel %vm52, %v401, 0
  %v507 = vsel %vm52, %v403, 0
  %v510 = vsel %vm52, %v405, 0
  %v513 = vsel %vm52, %v407, 0
  %v516 = vsel %vm52, %v409, 0
  %v519 = vsel %vm52, %v411, 0
  %v522 = vsel %vm52, %v413, 0
  %v525 = vsel %vm52, %v415, 0
  %v528 = vsel %vm52, %v417, 0
  %v531 = vsel %vm52, %v419, 0
  %v534 = vsel %vm52, %v421, 0
  %536 = vmatprep.subr.mxu0 0.0
  %537 = vmatpush1.msra.mxu0 %v422
  %538 = vmatprep.subr.mxu0 0.0
  %539 = vmatpush1.msra.mxu0 %v423
  %540 = vmatprep.subr.mxu0 0.0
  %541 = vmatpush1.msra.mxu0 %v424
  %542 = vmatprep.subr.mxu0 0.0
  %543 = vmatpush1.msra.mxu0 %v425
  %544 = vmatprep.subr.mxu0 0.0
  %545 = vmatpush1.msra.mxu0 %v426
  %546 = vmatprep.subr.mxu0 0.0
  %547 = vmatpush1.msra.mxu0 %v427
  %548 = vmatprep.subr.mxu0 0.0
  %549 = vmatpush1.msra.mxu0 %v428
  %550 = vmatprep.subr.mxu0 0.0
  %551 = vmatpush1.msra.mxu0 %v429
  %552 = vmatprep.subr.mxu0 0.0
  %553 = vmatpush1.msra.mxu0 %v430
  %554 = vmatprep.subr.mxu0 0.0
  %555 = vmatpush1.msra.mxu0 %v431
  %556 = vmatprep.subr.mxu0 0.0
  %557 = vmatpush1.msra.mxu0 %v432
  %558 = vmatprep.subr.mxu0 0.0
  %559 = vmatpush1.msra.mxu0 %v433
  %560 = vmatprep.subr.mxu0 0.0
  %561 = vmatpush1.msra.mxu0 %v434
  %562 = vmatprep.subr.mxu0 0.0
  %563 = vmatpush1.msra.mxu0 %v435
  %564 = vmatprep.subr.mxu0 0.0
  %565 = vmatpush1.msra.mxu0 %v436
  %566 = vmatprep.subr.mxu0 0.0
  %567 = vmatpush1.msra.mxu0 %v437
  %568 = vmatprep.subr.mxu0 0.0
  %569 = vmatpush1.msra.mxu0 %v438
  %570 = vmatprep.subr.mxu0 0.0
  %571 = vmatpush1.msra.mxu0 %v439
  %572 = vmatprep.subr.mxu0 0.0
  %573 = vmatpush1.msra.mxu0 0.0
  %574 = vmatprep.subr.mxu0 0.0
  %575 = vmatpush1.msra.mxu0 0.0
  %576 = vmatprep.subr.mxu0 0.0
  %577 = vmatpush1.msra.mxu0 0.0
  %578 = vmatprep.subr.mxu0 0.0
  %579 = vmatpush1.msra.mxu0 0.0
  %580 = vmatprep.subr.mxu0 0.0
  %581 = vmatpush1.msra.mxu0 0.0
  %582 = vmatprep.subr.mxu0 0.0
  %583 = vmatpush1.msra.mxu0 0.0
  %584 = vmatprep.subr.mxu0 0.0
  %585 = vmatpush1.msra.mxu0 0.0
  %586 = vmatprep.subr.mxu0 0.0
  %587 = vmatpush1.msra.mxu0 0.0
  %588 = vmatprep.subr.mxu0 0.0
  %589 = vmatpush1.msra.mxu0 0.0
  %590 = vmatprep.subr.mxu0 0.0
  %591 = vmatpush1.msra.mxu0 0.0
  %592 = vmatprep.subr.mxu0 0.0
  %593 = vmatpush1.msra.mxu0 0.0
  %594 = vmatprep.subr.mxu0 0.0
  %595 = vmatpush1.msra.mxu0 0.0
  %596 = vmatprep.subr.mxu0 0.0
  %597 = vmatpush1.msra.mxu0 0.0
  %598 = vmatprep.subr.mxu0 0.0
  %599 = vmatpush1.msra.mxu0 0.0
  %600 = vmatprep.mubr.f32.mxu0 %v441
  %601 = vmatmul.mubr.f32.gmra.mrb[0].mxu0 %v358
  %v602 = vpop.f32.mrb[0].mxu0
  %v603 = vadd.f32 0.0, %v602
  %v604 = vpop.f32.mrb[0].mxu0
  %605 = vmatprep.mubr.f32.mxu0 %v444
  %606 = vmatmul.mubr.f32.gmra.mrb[0].mxu0 %v360
  %v607 = vpop.f32.mrb[0].mxu0
  %v608 = vadd.f32 0.0, %v607
  %v609 = vpop.f32.mrb[0].mxu0
  %610 = vmatprep.mubr.f32.mxu0 %v447
  %611 = vmatmul.mubr.f32.gmra.mrb[0].mxu0 %v362
  %v612 = vpop.f32.mrb[0].mxu0
  %v613 = vadd.f32 0.0, %v612
  %v614 = vpop.f32.mrb[0].mxu0
  %615 = vmatprep.mubr.f32.mxu0 %v450
  %616 = vmatmul.mubr.f32.gmra.mrb[0].mxu0 %v364
  %v617 = vpop.f32.mrb[0].mxu0
  %v618 = vadd.f32 0.0, %v617
  %v619 = vpop.f32.mrb[0].mxu0
  %620 = vmatprep.mubr.f32.mxu0 %v453
  %621 = vmatmul.mubr.f32.gmra.mrb[0].mxu0 %v366
  %v622 = vpop.f32.mrb[0].mxu0
  %v623 = vadd.f32 0.0, %v622
  %v624 = vpop.f32.mrb[0].mxu0
  %625 = vmatprep.mubr.f32.mxu0 %v456
  %626 = vmatmul.mubr.f32.gmra.mrb[0].mxu0 %v368
  %v627 = vpop.f32.mrb[0].mxu0
  %v628 = vadd.f32 0.0, %v627
  %v629 = vpop.f32.mrb[0].mxu0
  %630 = vmatprep.mubr.f32.mxu0 %v459
  %631 = vmatmul.mubr.f32.gmra.mrb[0].mxu0 %v370
  %v632 = vpop.f32.mrb[0].mxu0
  %v633 = vadd.f32 0.0, %v632
  %v634 = vpop.f32.mrb[0].mxu0
  %635 = vmatprep.mubr.f32.mxu0 %v462
  %636 = vmatmul.mubr.f32.gmra.mrb[0].mxu0 %v372
  %v637 = vpop.f32.mrb[0].mxu0
  %v638 = vadd.f32 0.0, %v637
  %v639 = vpop.f32.mrb[0].mxu0
  %640 = vmatprep.mubr.f32.mxu0 %v465
  %641 = vmatmul.mubr.f32.gmra.mrb[0].mxu0 %v374
  %v642 = vpop.f32.mrb[0].mxu0
  %v643 = vadd.f32 0.0, %v642
  %v644 = vpop.f32.mrb[0].mxu0
  %645 = vmatprep.mubr.f32.mxu0 %v468
  %646 = vmatmul.mubr.f32.gmra.mrb[0].mxu0 %v376
  %v647 = vpop.f32.mrb[0].mxu0
  %v648 = vadd.f32 0.0, %v647
  %v649 = vpop.f32.mrb[0].mxu0
  %650 = vmatprep.mubr.f32.mxu0 %v471
  %651 = vmatmul.mubr.f32.gmra.mrb[0].mxu0 %v378
  %v652 = vpop.f32.mrb[0].mxu0
  %v653 = vadd.f32 0.0, %v652
  %v654 = vpop.f32.mrb[0].mxu0
  %655 = vmatprep.mubr.f32.mxu0 %v474
  %656 = vmatmul.mubr.f32.gmra.mrb[0].mxu0 %v380
  %v657 = vpop.f32.mrb[0].mxu0
  %v658 = vadd.f32 0.0, %v657
  %v659 = vpop.f32.mrb[0].mxu0
  %660 = vmatprep.mubr.f32.mxu0 %v477
  %661 = vmatmul.mubr.f32.gmra.mrb[0].mxu0 %v382
  %v662 = vpop.f32.mrb[0].mxu0
  %v663 = vadd.f32 0.0, %v662
  %v664 = vpop.f32.mrb[0].mxu0
  %665 = vmatprep.mubr.f32.mxu0 %v480
  %666 = vmatmul.mubr.f32.gmra.mrb[0].mxu0 %v384
  %v667 = vpop.f32.mrb[0].mxu0
  %v668 = vadd.f32 0.0, %v667
  %v669 = vpop.f32.mrb[0].mxu0
  %670 = vmatprep.mubr.f32.mxu0 %v483
  %671 = vmatmul.mubr.f32.gmra.mrb[0].mxu0 %v386
  %v672 = vpop.f32.mrb[0].mxu0
  %v673 = vadd.f32 0.0, %v672
  %v674 = vpop.f32.mrb[0].mxu0
  %675 = vmatprep.mubr.f32.mxu0 %v486
  %676 = vmatmul.mubr.f32.gmra.mrb[0].mxu0 %v388
  %v677 = vpop.f32.mrb[0].mxu0
  %v678 = vadd.f32 0.0, %v677
  %v679 = vpop.f32.mrb[0].mxu0
  %680 = vmatprep.mubr.f32.mxu0 %v489
  %681 = vmatmul.mubr.f32.gmra.mrb[0].mxu0 %v390
  %v682 = vpop.f32.mrb[0].mxu0
  %v683 = vadd.f32 0.0, %v682
  %v684 = vpop.f32.mrb[0].mxu0
  %685 = vmatprep.mubr.f32.mxu0 %v492
  %686 = vmatmul.mubr.f32.gmra.mrb[0].mxu0 %v392
  %v687 = vpop.f32.mrb[0].mxu0
  %v688 = vadd.f32 0.0, %v687
  %v689 = vpop.f32.mrb[0].mxu0
  %690 = vmatprep.mubr.f32.mxu0 %v495
  %691 = vmatmul.mubr.f32.gmra.mrb[0].mxu0 %v394
  %v692 = vpop.f32.mrb[0].mxu0
  %v693 = vadd.f32 0.0, %v692
  %v694 = vpop.f32.mrb[0].mxu0
  %695 = vmatprep.mubr.f32.mxu0 %v498
  %696 = vmatmul.mubr.f32.gmra.mrb[0].mxu0 %v396
  %v697 = vpop.f32.mrb[0].mxu0
  %v698 = vadd.f32 0.0, %v697
  %v699 = vpop.f32.mrb[0].mxu0
  %700 = vmatprep.mubr.f32.mxu0 %v501
  %701 = vmatmul.mubr.f32.gmra.mrb[0].mxu0 %v398
  %v702 = vpop.f32.mrb[0].mxu0
  %v703 = vadd.f32 0.0, %v702
  %v704 = vpop.f32.mrb[0].mxu0
  %705 = vmatprep.mubr.f32.mxu0 %v504
  %706 = vmatmul.mubr.f32.gmra.mrb[0].mxu0 %v400
  %v707 = vpop.f32.mrb[0].mxu0
  %v708 = vadd.f32 0.0, %v707
  %v709 = vpop.f32.mrb[0].mxu0
  %710 = vmatprep.mubr.f32.mxu0 %v507
  %711 = vmatmul.mubr.f32.gmra.mrb[0].mxu0 %v402
  %v712 = vpop.f32.mrb[0].mxu0
  %v713 = vadd.f32 0.0, %v712
  %v714 = vpop.f32.mrb[0].mxu0
  %715 = vmatprep.mubr.f32.mxu0 %v510
  %716 = vmatmul.mubr.f32.gmra.mrb[0].mxu0 %v404
  %v717 = vpop.f32.mrb[0].mxu0
  %v718 = vadd.f32 0.0, %v717
  %v719 = vpop.f32.mrb[0].mxu0
  %720 = vmatprep.mubr.f32.mxu0 %v513
  %721 = vmatmul.mubr.f32.gmra.mrb[0].mxu0 %v406
  %v722 = vpop.f32.mrb[0].mxu0
  %v723 = vadd.f32 0.0, %v722
  %v724 = vpop.f32.mrb[0].mxu0
  %725 = vmatprep.mubr.f32.mxu0 %v516
  %726 = vmatmul.mubr.f32.gmra.mrb[0].mxu0 %v408
  %v727 = vpop.f32.mrb[0].mxu0
  %v728 = vadd.f32 0.0, %v727
  %v729 = vpop.f32.mrb[0].mxu0
  %730 = vmatprep.mubr.f32.mxu0 %v519
  %731 = vmatmul.mubr.f32.gmra.mrb[0].mxu0 %v410
  %v732 = vpop.f32.mrb[0].mxu0
  %v733 = vadd.f32 0.0, %v732
  %v734 = vpop.f32.mrb[0].mxu0
  %735 = vmatprep.mubr.f32.mxu0 %v522
  %736 = vmatmul.mubr.f32.gmra.mrb[0].mxu0 %v412
  %v737 = vpop.f32.mrb[0].mxu0
  %v738 = vadd.f32 0.0, %v737
  %v739 = vpop.f32.mrb[0].mxu0
  %740 = vmatprep.mubr.f32.mxu0 %v525
  %741 = vmatmul.mubr.f32.gmra.mrb[0].mxu0 %v414
  %v742 = vpop.f32.mrb[0].mxu0
  %v743 = vadd.f32 0.0, %v742
  %v744 = vpop.f32.mrb[0].mxu0
  %745 = vmatprep.mubr.f32.mxu0 %v528
  %746 = vmatmul.mubr.f32.gmra.mrb[0].mxu0 %v416
  %v747 = vpop.f32.mrb[0].mxu0
  %v748 = vadd.f32 0.0, %v747
  %v749 = vpop.f32.mrb[0].mxu0
  %750 = vmatprep.mubr.f32.mxu0 %v531
  %751 = vmatmul.mubr.f32.gmra.mrb[0].mxu0 %v418
  %v752 = vpop.f32.mrb[0].mxu0
  %v753 = vadd.f32 0.0, %v752
  %v754 = vpop.f32.mrb[0].mxu0
  %755 = vmatprep.mubr.f32.mxu0 %v534
  %756 = vmatmul.mubr.f32.gmra.mrb[0].mxu0 %v420
  %v757 = vpop.f32.mrb[0].mxu0
  %v758 = vadd.f32 0.0, %v757
  %v759 = vpop.f32.mrb[0].mxu0
  %760 = vdwg.mxu0
  %v761 = vld [vmem:[%s4] sm:$0xff]
  %v762 = vld [vmem:[%s4 + $0x8] sm:$0xff]
  %v763 = vld [vmem:[%s4 + $0x10] sm:$0xff]
  %v764 = vld [vmem:[%s4 + $0x18] sm:$0xff]
  %v765 = vld [vmem:[%s4 + $0x20] sm:$0xff]
  %v766 = vld [vmem:[%s4 + $0x28] sm:$0xff]
  %v767 = vld [vmem:[%s4 + $0x30] sm:$0xff]
  %v768 = vld [vmem:[%s4 + $0x38] sm:$0xff]
  %v769 = vmul.f32 %v357, %v761
  %v770 = vmul.f32 %v357, %v762
  %v771 = vmul.f32 %v357, %v763
  %v772 = vmul.f32 %v357, %v764
  %v773 = vmul.f32 %v357, %v765
  %v774 = vmul.f32 %v357, %v766
  %v775 = vmul.f32 %v357, %v767
  %v776 = vmul.f32 %v357, %v768
  %v777 = vadd.f32 %v603, %v769
  %v778 = vadd.f32 %v608, %v770
  %v779 = vadd.f32 %v613, %v771
  %v780 = vadd.f32 %v618, %v772
  %v781 = vadd.f32 %v623, %v773
  %v782 = vadd.f32 %v628, %v774
  %v783 = vadd.f32 %v633, %v775
  %v784 = vadd.f32 %v638, %v776
  %v785 = vadd.f32 %v643, %v769
  %v786 = vadd.f32 %v648, %v770
  %v787 = vadd.f32 %v653, %v771
  %v788 = vadd.f32 %v658, %v772
  %v789 = vadd.f32 %v663, %v773
  %v790 = vadd.f32 %v668, %v774
  %v791 = vadd.f32 %v673, %v775
  %v792 = vadd.f32 %v678, %v776
  %v793 = vadd.f32 %v683, %v769
  %v794 = vadd.f32 %v688, %v770
  %v795 = vadd.f32 %v693, %v771
  %v796 = vadd.f32 %v698, %v772
  %v797 = vadd.f32 %v703, %v773
  %v798 = vadd.f32 %v708, %v774
  %v799 = vadd.f32 %v713, %v775
  %v800 = vadd.f32 %v718, %v776
  %v801 = vadd.f32 %v723, %v769
  %v802 = vadd.f32 %v728, %v770
  %v803 = vadd.f32 %v733, %v771
  %v804 = vadd.f32 %v738, %v772
  %v805 = vadd.f32 %v743, %v773
  %v806 = vadd.f32 %v748, %v774
  %v807 = vadd.f32 %v753, %v775
  %v808 = vadd.f32 %v758, %v776
  %v809 = vld [vmem:[%s3] sm:$0x1]
  %v811 = vlaneseq
  %v812 = vshrl.u32 %v811, 7
  %v813 = vsub.s32 0, %v812
  %v814 = vrot.slane %v809, %v813
  %v816 = vadd.f32 %v777, %v814
  %v817 = vadd.f32 %v778, %v814
  %v818 = vadd.f32 %v779, %v814
  %v819 = vadd.f32 %v780, %v814
  %v820 = vadd.f32 %v781, %v814
  %v821 = vadd.f32 %v782, %v814
  %v822 = vadd.f32 %v783, %v814
  %v823 = vadd.f32 %v784, %v814
  %v824 = vadd.f32 %v785, %v814
  %v825 = vadd.f32 %v786, %v814
  %v826 = vadd.f32 %v787, %v814
  %v827 = vadd.f32 %v788, %v814
  %v828 = vadd.f32 %v789, %v814
  %v829 = vadd.f32 %v790, %v814
  %v830 = vadd.f32 %v791, %v814
  %v831 = vadd.f32 %v792, %v814
  %v832 = vadd.f32 %v793, %v814
  %v833 = vadd.f32 %v794, %v814
  %v834 = vadd.f32 %v795, %v814
  %v835 = vadd.f32 %v796, %v814
  %v836 = vadd.f32 %v797, %v814
  %v837 = vadd.f32 %v798, %v814
  %v838 = vadd.f32 %v799, %v814
  %v839 = vadd.f32 %v800, %v814
  %v840 = vadd.f32 %v801, %v814
  %v841 = vadd.f32 %v802, %v814
  %v842 = vadd.f32 %v803, %v814
  %v843 = vadd.f32 %v804, %v814
  %v844 = vadd.f32 %v805, %v814
  %v845 = vadd.f32 %v806, %v814
  %v846 = vadd.f32 %v807, %v814
  %v847 = vadd.f32 %v808, %v814
  %vm848 = vcmp.ge.f32.partialorder %v816, 0.0
  %vm849 = vcmp.ge.f32.partialorder %v817, 0.0
  %vm850 = vcmp.ge.f32.partialorder %v818, 0.0
  %vm851 = vcmp.ge.f32.partialorder %v819, 0.0
  %vm852 = vcmp.ge.f32.partialorder %v820, 0.0
  %vm853 = vcmp.ge.f32.partialorder %v821, 0.0
  %vm854 = vcmp.ge.f32.partialorder %v822, 0.0
  %vm855 = vcmp.ge.f32.partialorder %v823, 0.0
  %vm856 = vcmp.ge.f32.partialorder %v824, 0.0
  %vm857 = vcmp.ge.f32.partialorder %v825, 0.0
  %vm858 = vcmp.ge.f32.partialorder %v826, 0.0
  %vm859 = vcmp.ge.f32.partialorder %v827, 0.0
  %vm860 = vcmp.ge.f32.partialorder %v828, 0.0
  %vm861 = vcmp.ge.f32.partialorder %v829, 0.0
  %vm862 = vcmp.ge.f32.partialorder %v830, 0.0
  %vm863 = vcmp.ge.f32.partialorder %v831, 0.0
  %vm864 = vcmp.ge.f32.partialorder %v832, 0.0
  %vm865 = vcmp.ge.f32.partialorder %v833, 0.0
  %vm866 = vcmp.ge.f32.partialorder %v834, 0.0
  %vm867 = vcmp.ge.f32.partialorder %v835, 0.0
  %vm868 = vcmp.ge.f32.partialorder %v836, 0.0
  %vm869 = vcmp.ge.f32.partialorder %v837, 0.0
  %vm870 = vcmp.ge.f32.partialorder %v838, 0.0
  %vm871 = vcmp.ge.f32.partialorder %v839, 0.0
  %vm872 = vcmp.ge.f32.partialorder %v840, 0.0
  %vm873 = vcmp.ge.f32.partialorder %v841, 0.0
  %vm874 = vcmp.ge.f32.partialorder %v842, 0.0
  %vm875 = vcmp.ge.f32.partialorder %v843, 0.0
  %vm876 = vcmp.ge.f32.partialorder %v844, 0.0
  %vm877 = vcmp.ge.f32.partialorder %v845, 0.0
  %vm878 = vcmp.ge.f32.partialorder %v846, 0.0
  %vm879 = vcmp.ge.f32.partialorder %v847, 0.0
  %v880 = vmul.f32 %v816, 0.2
  %v881 = vmul.f32 %v817, 0.2
  %v882 = vmul.f32 %v818, 0.2
  %v883 = vmul.f32 %v819, 0.2
  %v884 = vmul.f32 %v820, 0.2
  %v885 = vmul.f32 %v821, 0.2
  %v886 = vmul.f32 %v822, 0.2
  %v887 = vmul.f32 %v823, 0.2
  %v888 = vmul.f32 %v824, 0.2
  %v889 = vmul.f32 %v825, 0.2
  %v890 = vmul.f32 %v826, 0.2
  %v891 = vmul.f32 %v827, 0.2
  %v892 = vmul.f32 %v828, 0.2
  %v893 = vmul.f32 %v829, 0.2
  %v894 = vmul.f32 %v830, 0.2
  %v895 = vmul.f32 %v831, 0.2
  %v896 = vmul.f32 %v832, 0.2
  %v897 = vmul.f32 %v833, 0.2
  %v898 = vmul.f32 %v834, 0.2
  %v899 = vmul.f32 %v835, 0.2
  %v900 = vmul.f32 %v836, 0.2
  %v901 = vmul.f32 %v837, 0.2
  %v902 = vmul.f32 %v838, 0.2
  %v903 = vmul.f32 %v839, 0.2
  %v904 = vmul.f32 %v840, 0.2
  %v905 = vmul.f32 %v841, 0.2
  %v906 = vmul.f32 %v842, 0.2
  %v907 = vmul.f32 %v843, 0.2
  %v908 = vmul.f32 %v844, 0.2
  %v909 = vmul.f32 %v845, 0.2
  %v910 = vmul.f32 %v846, 0.2
  %v911 = vmul.f32 %v847, 0.2
  %v912 = vsel %vm848, %v816, %v880
  %v913 = vsel %vm849, %v817, %v881
  %v914 = vsel %vm850, %v818, %v882
  %v915 = vsel %vm851, %v819, %v883
  %v916 = vsel %vm852, %v820, %v884
  %v917 = vsel %vm853, %v821, %v885
  %v918 = vsel %vm854, %v822, %v886
  %v919 = vsel %vm855, %v823, %v887
  %v920 = vsel %vm856, %v824, %v888
  %v921 = vsel %vm857, %v825, %v889
  %v922 = vsel %vm858, %v826, %v890
  %v923 = vsel %vm859, %v827, %v891
  %v924 = vsel %vm860, %v828, %v892
  %v925 = vsel %vm861, %v829, %v893
  %v926 = vsel %vm862, %v830, %v894
  %v927 = vsel %vm863, %v831, %v895
  %v928 = vsel %vm864, %v832, %v896
  %v929 = vsel %vm865, %v833, %v897
  %v930 = vsel %vm866, %v834, %v898
  %v931 = vsel %vm867, %v835, %v899
  %v932 = vsel %vm868, %v836, %v900
  %v933 = vsel %vm869, %v837, %v901
  %v934 = vsel %vm870, %v838, %v902
  %v935 = vsel %vm871, %v839, %v903
  %v936 = vsel %vm872, %v840, %v904
  %v937 = vsel %vm873, %v841, %v905
  %v938 = vsel %vm874, %v842, %v906
  %v939 = vsel %vm875, %v843, %v907
  %v940 = vsel %vm876, %v844, %v908
  %v941 = vsel %vm877, %v845, %v909
  %v942 = vsel %vm878, %v846, %v910
  %v943 = vsel %vm879, %v847, %v911
  %v944 = vmul.f32 %v912, 1.4142135
  %v945 = vmul.f32 %v913, 1.4142135
  %v946 = vmul.f32 %v914, 1.4142135
  %v947 = vmul.f32 %v915, 1.4142135
  %v948 = vmul.f32 %v916, 1.4142135
  %v949 = vmul.f32 %v917, 1.4142135
  %v950 = vmul.f32 %v918, 1.4142135
  %v951 = vmul.f32 %v919, 1.4142135
  %v952 = vmul.f32 %v920, 1.4142135
  %v953 = vmul.f32 %v921, 1.4142135
  %v954 = vmul.f32 %v922, 1.4142135
  %v955 = vmul.f32 %v923, 1.4142135
  %v956 = vmul.f32 %v924, 1.4142135
  %v957 = vmul.f32 %v925, 1.4142135
  %v958 = vmul.f32 %v926, 1.4142135
  %v959 = vmul.f32 %v927, 1.4142135
  %v960 = vmul.f32 %v928, 1.4142135
  %v961 = vmul.f32 %v929, 1.4142135
  %v962 = vmul.f32 %v930, 1.4142135
  %v963 = vmul.f32 %v931, 1.4142135
  %v964 = vmul.f32 %v932, 1.4142135
  %v965 = vmul.f32 %v933, 1.4142135
  %v966 = vmul.f32 %v934, 1.4142135
  %v967 = vmul.f32 %v935, 1.4142135
  %v968 = vmul.f32 %v936, 1.4142135
  %v969 = vmul.f32 %v937, 1.4142135
  %v970 = vmul.f32 %v938, 1.4142135
  %v971 = vmul.f32 %v939, 1.4142135
  %v972 = vmul.f32 %v940, 1.4142135
  %v973 = vmul.f32 %v941, 1.4142135
  %v974 = vmul.f32 %v942, 1.4142135
  %v975 = vmul.f32 %v943, 1.4142135
  %976 = vst.msk [vmem:[%s5] sm:$0xff] %vm52, %v944
  %977 = vst.msk [vmem:[%s5 + $0x8] sm:$0xff] %vm52, %v945
  %978 = vst.msk [vmem:[%s5 + $0x10] sm:$0xff] %vm52, %v946
  %979 = vst.msk [vmem:[%s5 + $0x18] sm:$0xff] %vm52, %v947
  %980 = vst.msk [vmem:[%s5 + $0x20] sm:$0xff] %vm52, %v948
  %981 = vst.msk [vmem:[%s5 + $0x28] sm:$0xff] %vm52, %v949
  %982 = vst.msk [vmem:[%s5 + $0x30] sm:$0xff] %vm52, %v950
  %983 = vst.msk [vmem:[%s5 + $0x38] sm:$0xff] %vm52, %v951
  %984 = vst.msk [vmem:[%s5 + $0x40] sm:$0xff] %vm52, %v952
  %985 = vst.msk [vmem:[%s5 + $0x48] sm:$0xff] %vm52, %v953
  %986 = vst.msk [vmem:[%s5 + $0x50] sm:$0xff] %vm52, %v954
  %987 = vst.msk [vmem:[%s5 + $0x58] sm:$0xff] %vm52, %v955
  %988 = vst.msk [vmem:[%s5 + $0x60] sm:$0xff] %vm52, %v956
  %989 = vst.msk [vmem:[%s5 + $0x68] sm:$0xff] %vm52, %v957
  %990 = vst.msk [vmem:[%s5 + $0x70] sm:$0xff] %vm52, %v958
  %991 = vst.msk [vmem:[%s5 + $0x78] sm:$0xff] %vm52, %v959
  %992 = vst.msk [vmem:[%s5 + $0x80] sm:$0xff] %vm52, %v960
  %993 = vst.msk [vmem:[%s5 + $0x88] sm:$0xff] %vm52, %v961
  %994 = vst.msk [vmem:[%s5 + $0x90] sm:$0xff] %vm52, %v962
  %995 = vst.msk [vmem:[%s5 + $0x98] sm:$0xff] %vm52, %v963
  %996 = vst.msk [vmem:[%s5 + $0xa0] sm:$0xff] %vm52, %v964
  %997 = vst.msk [vmem:[%s5 + $0xa8] sm:$0xff] %vm52, %v965
  %998 = vst.msk [vmem:[%s5 + $0xb0] sm:$0xff] %vm52, %v966
  %999 = vst.msk [vmem:[%s5 + $0xb8] sm:$0xff] %vm52, %v967
  %1000 = vst.msk [vmem:[%s5 + $0xc0] sm:$0xff] %vm52, %v968
  %1001 = vst.msk [vmem:[%s5 + $0xc8] sm:$0xff] %vm52, %v969
  %1002 = vst.msk [vmem:[%s5 + $0xd0] sm:$0xff] %vm52, %v970
  %1003 = vst.msk [vmem:[%s5 + $0xd8] sm:$0xff] %vm52, %v971
  %1004 = vst.msk [vmem:[%s5 + $0xe0] sm:$0xff] %vm52, %v972
  %1005 = vst.msk [vmem:[%s5 + $0xe8] sm:$0xff] %vm52, %v973
  %1006 = vst.msk [vmem:[%s5 + $0xf0] sm:$0xff] %vm52, %v974
  %1007 = vst.msk [vmem:[%s5 + $0xf8] sm:$0xff] %vm52, %v975
  // Predicated region
  $region22: #{encoder_epilogue_forward.2} parent=0 // pred_check
    _
  $region23: #{encoder_epilogue_forward.2} parent=0 // pred_check_branch
    %1009 = sbr.rel (0) target = $region25
  $region24: #{encoder_epilogue_forward.2} parent=0 // pred_region
    _
  $region25: #{encoder_epilogue_forward.2} parent=0 // pred_fallthru
    _
  // Predicated region
  $region26: #{encoder_epilogue_forward.2} parent=0 // pred_check
    _
  $region27: #{encoder_epilogue_forward.2} parent=0 // pred_check_branch
    %1011 = sbr.rel (0) target = $region29
  $region28: #{encoder_epilogue_forward.2} parent=0 // pred_region
    _
  $region29: #{encoder_epilogue_forward.2} parent=0 // pred_fallthru
    _

</llo_original>
